<compile_context>
chip_gen: v7x
topology: tpu7x:2x2x1
jax: 0.10.0
libtpu: 0.0.40
codegen_flags: <defaults>
</compile_context>

<pallas_src>
import functools

import jax
import jax.numpy as jnp
from jax.experimental import pallas as pl
from jax.experimental.pallas import tpu as pltpu


C_STEM_PAD = 128          # merged stem width (8 resnet + 16 effnet, padded)
F_RESNET = 512
F_EFFNET = 1408
F_TOTAL = F_RESNET + F_EFFNET   # 1920 = 15 * 128 (lane-dense)


# ---------------------------------------------------------------------------
# Fused backbone kernel: conv-stem matmul + per-branch activation +
# global-average-pool accumulation + projection (finalize step).
# grid = (N, S // tile_s)   — N parallel, spatial reduction axis last.
# ---------------------------------------------------------------------------
def _fused_backbone_kernel(p_ref, wstem_ref, bstem_ref, wproj_ref, bproj_ref,
                           f_ref, acc_ref, *, inv_s, c_split, f_split):
    s = pl.program_id(1)

    @pl.when(s == 0)
    def _():
        acc_ref[...] = jnp.zeros_like(acc_ref)

    patches = p_ref[0]                                     # (tile_s, 9) bf16
    y = jnp.dot(patches, wstem_ref[...],
                preferred_element_type=jnp.float32)        # (tile_s, 128) f32
    y = y + bstem_ref[...]
    col = jax.lax.broadcasted_iota(jnp.int32, y.shape, 1)
    # resnet branch (cols < c_split): ReLU; effnet branch (and zero pad): SiLU.
    y = jnp.where(col < c_split, jnp.maximum(y, 0.0), y * jax.nn.sigmoid(y))
    acc_ref[...] += jnp.sum(y, axis=0, keepdims=True)      # running spatial sum

    @pl.when(s == pl.num_programs(1) - 1)
    def _():
        pooled = acc_ref[...] * inv_s                      # (1, 128) GAP
        feats = jnp.dot(pooled.astype(jnp.bfloat16), wproj_ref[...],
                        preferred_element_type=jnp.float32) + bproj_ref[...]
        colf = jax.lax.broadcasted_iota(jnp.int32, feats.shape, 1)
        feats = jnp.where(colf < f_split, jnp.maximum(feats, 0.0),
                          feats * jax.nn.sigmoid(feats))   # (1, 1920)
        f_ref[...] = feats.reshape(f_ref.shape).astype(f_ref.dtype)


def fused_backbone(patches, wstem, bstem, wproj, bproj, *, tile_s=128):
    """patches: (N, S, 9) bf16 -> features (N, 1, F_TOTAL) bf16."""
    N, S, K = patches.shape
    assert K == 9
    if S % tile_s != 0:
        tile_s = S
    grid = (N, S // tile_s)
    return pl.pallas_call(
        functools.partial(_fused_backbone_kernel, inv_s=1.0 / S,
                          c_split=8, f_split=F_RESNET),
        out_shape=jax.ShapeDtypeStruct((N, 1, F_TOTAL), jnp.bfloat16),
        grid=grid,
        in_specs=[
            pl.BlockSpec((1, tile_s, 9), lambda n, s: (n, s, 0)),
            pl.BlockSpec((9, C_STEM_PAD), lambda n, s: (0, 0)),
            pl.BlockSpec((1, C_STEM_PAD), lambda n, s: (0, 0)),
            pl.BlockSpec((C_STEM_PAD, F_TOTAL), lambda n, s: (0, 0)),
            pl.BlockSpec((1, F_TOTAL), lambda n, s: (0, 0)),
        ],
        out_specs=pl.BlockSpec((1, 1, F_TOTAL), lambda n, s: (n, 0, 0)),
        scratch_shapes=[pltpu.VMEM((1, C_STEM_PAD), jnp.float32)],
        compiler_params=pltpu.CompilerParams(
            dimension_semantics=("parallel", "arbitrary")),
    )(patches, wstem, bstem, wproj, bproj)


# ---------------------------------------------------------------------------
# Classification head: Linear -> ReLU -> Dropout(eval: identity) -> Linear.
# Output padded to 128 lanes (sliced back to num_classes outside).
# ---------------------------------------------------------------------------
def _head_kernel(f_ref, w1_ref, b1_ref, w2_ref, b2_ref, o_ref):
    h = jnp.dot(f_ref[...], w1_ref[...], preferred_element_type=jnp.float32)
    h = jnp.maximum(h + b1_ref[...], 0.0)
    # nn.Dropout is identity at inference time.
    y = jnp.dot(h.astype(jnp.bfloat16), w2_ref[...],
                preferred_element_type=jnp.float32) + b2_ref[...]
    o_ref[...] = y.astype(o_ref.dtype)


def classification_head(features, w1, b1, w2p, b2p):
    B, Fin = features.shape
    Fin2, H = w1.shape
    H2, Cp = w2p.shape
    assert Fin == Fin2 and H == H2
    return pl.pallas_call(
        _head_kernel,
        out_shape=jax.ShapeDtypeStruct((B, Cp), jnp.float32),
        grid=(1,),
        in_specs=[
            pl.BlockSpec((B, Fin), lambda i: (0, 0)),
            pl.BlockSpec((Fin, H), lambda i: (0, 0)),
            pl.BlockSpec((1, H), lambda i: (0, 0)),
            pl.BlockSpec((H, Cp), lambda i: (0, 0)),
            pl.BlockSpec((1, Cp), lambda i: (0, 0)),
        ],
        out_specs=pl.BlockSpec((B, Cp), lambda i: (0, 0)),
    )(features, w1, b1, w2p, b2p)


# ---------------------------------------------------------------------------
# Parameter init (deterministic synthetic weights) and forward.
# ---------------------------------------------------------------------------
def _init_linear(key, fan_in, fan_out):
    kw, kb = jax.random.split(key)
    scale = 1.0 / jnp.sqrt(jnp.float32(fan_in))
    w = jax.random.normal(kw, (fan_in, fan_out), jnp.float32) * scale
    b = jax.random.normal(kb, (fan_out,), jnp.float32) * 0.01
    return w, b


def init_model(key, num_classes, separate_inputs, head_hidden=256):
    C_R, C_E = 8, 16
    k1, k2, k3, k4, k5, k6 = jax.random.split(key, 6)

    # Stems initialized for a 3-channel (replicated) input, then folded over
    # the channel axis: conv(x repeated 3x) == conv_folded(x), bit-identical.
    rw, rb = _init_linear(k1, 3 * 9, C_R)
    ew, eb = _init_linear(k2, 3 * 9, C_E)
    rw9 = rw.reshape(3, 9, C_R).sum(0)
    ew9 = ew.reshape(3, 9, C_E).sum(0)
    wstem = jnp.zeros((9, C_STEM_PAD), jnp.float32)
    wstem = wstem.at[:, :C_R].set(rw9).at[:, C_R:C_R + C_E].set(ew9)
    bstem = jnp.zeros((1, C_STEM_PAD), jnp.float32)
    bstem = bstem.at[0, :C_R].set(rb).at[0, C_R:C_R + C_E].set(eb)

    # Per-branch projections merged into one block-structured (128, 1920) map.
    rpw, rpb = _init_linear(k3, C_R, F_RESNET)
    epw, epb = _init_linear(k4, C_E, F_EFFNET)
    wproj = jnp.zeros((C_STEM_PAD, F_TOTAL), jnp.float32)
    wproj = wproj.at[:C_R, :F_RESNET].set(rpw)
    wproj = wproj.at[C_R:C_R + C_E, F_RESNET:].set(epw)
    bproj = jnp.concatenate([rpb, epb]).reshape(1, F_TOTAL)

    # Classification head (output padded to a multiple of 128 lanes).
    feat_total = separate_inputs * F_TOTAL
    w1, b1 = _init_linear(k5, feat_total, head_hidden)
    w2, b2 = _init_linear(k6, head_hidden, num_classes)
    ncp = ((num_classes + 127) // 128) * 128
    w2p = jnp.zeros((head_hidden, ncp), jnp.float32).at[:, :num_classes].set(w2)
    b2p = jnp.zeros((1, ncp), jnp.float32).at[0, :num_classes].set(b2)

    return dict(
        wstem=wstem.astype(jnp.bfloat16), bstem=bstem,
        wproj=wproj.astype(jnp.bfloat16), bproj=bproj,
        w1=w1.astype(jnp.bfloat16), b1=b1.reshape(1, -1),
        w2p=w2p.astype(jnp.bfloat16), b2p=b2p,
        num_classes=num_classes,
    )


def ensemble_forward(x, params, separate_inputs, tile_s=128):
    """x: (B, C, H, W) NCHW float32 -> logits (B, num_classes)."""
    B, C, H, W = x.shape
    if C < separate_inputs:
        raise ValueError(
            f"Can't split. Input data has {C} channels whereas "
            f"separate_inputs parameter is {separate_inputs}.")
    SI = separate_inputs
    N = B * SI
    S = H * W

    # Batch the per-slice loop: all slices share weights (deepcopy at init).
    xs = x[:, :SI].reshape(N, H, W)
    xp = jnp.pad(xs, ((0, 0), (1, 1), (1, 1)))
    # 3x3 / stride 1 / pad 1 patches; the 3x channel repeat is folded into the
    # weights, so K is 9 (not 27).
    taps = [xp[:, dh:dh + H, dw:dw + W] for dh in range(3) for dw in range(3)]
    patches = jnp.stack(taps, axis=-1).reshape(N, S, 9).astype(jnp.bfloat16)

    feats = fused_backbone(patches, params["wstem"], params["bstem"],
                           params["wproj"], params["bproj"], tile_s=tile_s)
    # (B*SI, 1, 1920) -> (B, SI*1920): matches torch.cat(features_list, dim=1).
    features = feats.reshape(B, SI * F_TOTAL)

    logits_pad = classification_head(features, params["w1"], params["b1"],
                                     params["w2p"], params["b2p"])
    return logits_pad[:, :params["num_classes"]]


if __name__ == "__main__":
    num_classes = 10
    separate_inputs = 2

    key = jax.random.PRNGKey(0)
    kx, kp = jax.random.split(key)
    x = jax.random.normal(kx, (2, 4, 16, 16), jnp.float32)     # NCHW
    params = init_model(kp, num_classes, separate_inputs)

    out = ensemble_forward(x, params, separate_inputs)
    out = jax.block_until_ready(out)
    assert out.shape == (2, num_classes), out.shape
    assert jnp.all(jnp.isfinite(out))
    print("KERNEL_OK")
</pallas_src>

<mosaic_0001>
module attributes {stable_mosaic.version = 11 : i64} {
  func.func @_fused_backbone_kernel(%arg0: i32, %arg1: i32, %arg2: memref<1x128x9xbf16, #tpu.memory_space<vmem>>, %arg3: memref<9x128xbf16, #tpu.memory_space<vmem>>, %arg4: memref<1x128xf32, #tpu.memory_space<vmem>>, %arg5: memref<128x1920xbf16, #tpu.memory_space<vmem>>, %arg6: memref<1x1920xf32, #tpu.memory_space<vmem>>, %arg7: memref<1x1x1920xbf16, #tpu.memory_space<vmem>>, %arg8: memref<1x128xf32, #tpu.memory_space<vmem>>) attributes {dimension_semantics = [#tpu.dimension_semantics<parallel>, #tpu.dimension_semantics<arbitrary>], iteration_bounds = array<i64: 4, 2>, scalar_prefetch = 0 : i64, scratch_operands = 1 : i64, tpu.core_type = #tpu.core_type<tc>, window_params = [{transform_indices = @transform_0, window_bounds = array<i64: 1, 128, 9>}, {pipeline_mode = #tpu.pipeline_mode<synchronous>, transform_indices = @transform_1, window_bounds = array<i64: 9, 128>}, {pipeline_mode = #tpu.pipeline_mode<synchronous>, transform_indices = @transform_2, window_bounds = array<i64: 1, 128>}, {pipeline_mode = #tpu.pipeline_mode<synchronous>, transform_indices = @transform_3, window_bounds = array<i64: 128, 1920>}, {pipeline_mode = #tpu.pipeline_mode<synchronous>, transform_indices = @transform_4, window_bounds = array<i64: 1, 1920>}, {transform_indices = @transform_5, window_bounds = array<i64: 1, 1, 1920>}]} {
    %c0_i32 = arith.constant 0 : i32
    %0 = arith.cmpi eq, %arg1, %c0_i32 : i32
    %1 = arith.extui %0 : i1 to i32
    %c0_i32_0 = arith.constant 0 : i32
    %2 = arith.cmpi ne, %1, %c0_i32_0 : i32
    scf.if %2 {
      %cst_15 = arith.constant 0.000000e+00 : f32
      %30 = vector.broadcast %cst_15 : f32 to vector<1x128xf32>
      %c0_16 = arith.constant 0 : index
      %c0_17 = arith.constant 0 : index
      %31 = vector.load %arg8[%c0_16, %c0_17] : memref<1x128xf32, #tpu.memory_space<vmem>>, vector<1x128xf32>
      tpu.vector_store %arg8[%c0_16, %c0_17], %30 {strides = array<i32>} : memref<1x128xf32, #tpu.memory_space<vmem>>, vector<1x128xf32>,
    } else {
    }
    %c0 = arith.constant 0 : index
    %c0_1 = arith.constant 0 : index
    %c0_2 = arith.constant 0 : index
    %3 = vector.load %arg2[%c0, %c0_1, %c0_2] : memref<1x128x9xbf16, #tpu.memory_space<vmem>>, vector<1x128x9xbf16>
    %4 = vector.shape_cast %3 : vector<1x128x9xbf16> to vector<128x9xbf16>
    %c0_3 = arith.constant 0 : index
    %c0_4 = arith.constant 0 : index
    %5 = vector.load %arg3[%c0_3, %c0_4] : memref<9x128xbf16, #tpu.memory_space<vmem>>, vector<9x128xbf16>
    %cst = arith.constant dense<0.000000e+00> : vector<128x128xf32>
    %6 = tpu.matmul %4, %5, %cst {dimension_numbers = #tpu.dot_dimension_numbers<[1], [0], [0], [1], [0, 0, 1, 1], [], []>} : vector<128x9xbf16>, vector<9x128xbf16>, vector<128x128xf32> -> vector<128x128xf32>
    %c0_5 = arith.constant 0 : index
    %c0_6 = arith.constant 0 : index
    %7 = vector.load %arg4[%c0_5, %c0_6] : memref<1x128xf32, #tpu.memory_space<vmem>>, vector<1x128xf32>
    %8 = vector.broadcast %7 : vector<1x128xf32> to vector<128x128xf32>
    %9 = arith.addf %6, %8 : vector<128x128xf32>
    %10 = tpu.iota {dimensions = array<i32: 1>} : vector<128x128xi32>
    %c8_i32 = arith.constant 8 : i32
    %11 = vector.broadcast %c8_i32 : i32 to vector<128x128xi32>
    %12 = arith.cmpi slt, %10, %11 : vector<128x128xi32>
    %cst_7 = arith.constant 0.000000e+00 : f32
    %13 = vector.broadcast %cst_7 : f32 to vector<128x128xf32>
    %14 = arith.maximumf %9, %13 : vector<128x128xf32>
    %15 = arith.negf %9 : vector<128x128xf32>
    %16 = math.exp %15 : vector<128x128xf32>
    %cst_8 = arith.constant 1.000000e+00 : f32
    %17 = vector.broadcast %cst_8 : f32 to vector<128x128xf32>
    %18 = arith.addf %17, %16 : vector<128x128xf32>
    %19 = arith.divf %17, %18 : vector<128x128xf32>
    %20 = arith.mulf %9, %19 : vector<128x128xf32>
    %21 = arith.select %12, %14, %20 : vector<128x128xi1>, vector<128x128xf32>
    %c0_9 = arith.constant 0 : index
    %c0_10 = arith.constant 0 : index
    %22 = vector.load %arg8[%c0_9, %c0_10] : memref<1x128xf32, #tpu.memory_space<vmem>>, vector<1x128xf32>
    %cst_11 = arith.constant dense<0.000000e+00> : vector<128xf32>
    %23 = vector.multi_reduction <add>, %21, %cst_11 [0] : vector<128x128xf32> to vector<128xf32>
    %24 = vector.shape_cast %23 : vector<128xf32> to vector<1x128xf32>
    %25 = arith.addf %22, %24 : vector<1x128xf32>
    %c0_12 = arith.constant 0 : index
    %c0_13 = arith.constant 0 : index
    %26 = vector.load %arg8[%c0_12, %c0_13] : memref<1x128xf32, #tpu.memory_space<vmem>>, vector<1x128xf32>
    tpu.vector_store %arg8[%c0_12, %c0_13], %25 {strides = array<i32>} : memref<1x128xf32, #tpu.memory_space<vmem>>, vector<1x128xf32>,
    %c1_i32 = arith.constant 1 : i32
    %27 = arith.cmpi eq, %arg1, %c1_i32 : i32
    %28 = arith.extui %27 : i1 to i32
    %c0_i32_14 = arith.constant 0 : i32
    %29 = arith.cmpi ne, %28, %c0_i32_14 : i32
    scf.if %29 {
      %c0_15 = arith.constant 0 : index
      %c0_16 = arith.constant 0 : index
      %30 = vector.load %arg8[%c0_15, %c0_16] : memref<1x128xf32, #tpu.memory_space<vmem>>, vector<1x128xf32>
      %cst_17 = arith.constant 3.906250e-03 : f32
      %31 = vector.broadcast %cst_17 : f32 to vector<1x128xf32>
      %32 = arith.mulf %30, %31 : vector<1x128xf32>
      %33 = arith.truncf %32 : vector<1x128xf32> to vector<1x128xbf16>
      %c0_18 = arith.constant 0 : index
      %c0_19 = arith.constant 0 : index
      %34 = vector.load %arg5[%c0_18, %c0_19] : memref<128x1920xbf16, #tpu.memory_space<vmem>>, vector<128x1920xbf16>
      %cst_20 = arith.constant dense<0.000000e+00> : vector<1x1920xf32>
      %35 = tpu.matmul %33, %34, %cst_20 {dimension_numbers = #tpu.dot_dimension_numbers<[1], [0], [0], [1], [0, 0, 1, 1], [], []>} : vector<1x128xbf16>, vector<128x1920xbf16>, vector<1x1920xf32> -> vector<1x1920xf32>
      %c0_21 = arith.constant 0 : index
      %c0_22 = arith.constant 0 : index
      %36 = vector.load %arg6[%c0_21, %c0_22] : memref<1x1920xf32, #tpu.memory_space<vmem>>, vector<1x1920xf32>
      %37 = arith.addf %35, %36 : vector<1x1920xf32>
      %38 = tpu.iota {dimensions = array<i32: 1>} : vector<1x1920xi32>
      %c512_i32 = arith.constant 512 : i32
      %39 = vector.broadcast %c512_i32 : i32 to vector<1x1920xi32>
      %40 = arith.cmpi slt, %38, %39 : vector<1x1920xi32>
      %cst_23 = arith.constant 0.000000e+00 : f32
      %41 = vector.broadcast %cst_23 : f32 to vector<1x1920xf32>
      %42 = arith.maximumf %37, %41 : vector<1x1920xf32>
      %43 = arith.negf %37 : vector<1x1920xf32>
      %44 = math.exp %43 : vector<1x1920xf32>
      %cst_24 = arith.constant 1.000000e+00 : f32
      %45 = vector.broadcast %cst_24 : f32 to vector<1x1920xf32>
      %46 = arith.addf %45, %44 : vector<1x1920xf32>
      %47 = arith.divf %45, %46 : vector<1x1920xf32>
      %48 = arith.mulf %37, %47 : vector<1x1920xf32>
      %49 = arith.select %40, %42, %48 : vector<1x1920xi1>, vector<1x1920xf32>
      %50 = vector.shape_cast %49 : vector<1x1920xf32> to vector<1x1x1920xf32>
      %51 = arith.truncf %50 : vector<1x1x1920xf32> to vector<1x1x1920xbf16>
      %c0_25 = arith.constant 0 : index
      %c0_26 = arith.constant 0 : index
      %c0_27 = arith.constant 0 : index
      %52 = vector.load %arg7[%c0_25, %c0_26, %c0_27] : memref<1x1x1920xbf16, #tpu.memory_space<vmem>>, vector<1x1x1920xbf16>
      tpu.vector_store %arg7[%c0_25, %c0_26, %c0_27], %51 {strides = array<i32>} : memref<1x1x1920xbf16, #tpu.memory_space<vmem>>, vector<1x1x1920xbf16>,
    } else {
    }
    return
  }
  func.func @transform_0(%arg0: i32, %arg1: i32) -> (i32, i32, i32) {
    %c0_i32 = arith.constant 0 : i32
    %c0_i32_0 = arith.constant 0 : i32
    return %arg0, %arg1, %c0_i32 : i32, i32, i32
  }
  func.func @transform_1(%arg0: i32, %arg1: i32) -> (i32, i32) {
    %c0_i32 = arith.constant 0 : i32
    %c0_i32_0 = arith.constant 0 : i32
    %c0_i32_1 = arith.constant 0 : i32
    return %c0_i32, %c0_i32_0 : i32, i32
  }
  func.func @transform_2(%arg0: i32, %arg1: i32) -> (i32, i32) {
    %c0_i32 = arith.constant 0 : i32
    %c0_i32_0 = arith.constant 0 : i32
    %c0_i32_1 = arith.constant 0 : i32
    return %c0_i32, %c0_i32_0 : i32, i32
  }
  func.func @transform_3(%arg0: i32, %arg1: i32) -> (i32, i32) {
    %c0_i32 = arith.constant 0 : i32
    %c0_i32_0 = arith.constant 0 : i32
    %c0_i32_1 = arith.constant 0 : i32
    return %c0_i32, %c0_i32_0 : i32, i32
  }
  func.func @transform_4(%arg0: i32, %arg1: i32) -> (i32, i32) {
    %c0_i32 = arith.constant 0 : i32
    %c0_i32_0 = arith.constant 0 : i32
    %c0_i32_1 = arith.constant 0 : i32
    return %c0_i32, %c0_i32_0 : i32, i32
  }
  func.func @transform_5(%arg0: i32, %arg1: i32) -> (i32, i32, i32) {
    %c0_i32 = arith.constant 0 : i32
    %c0_i32_0 = arith.constant 0 : i32
    %c0_i32_1 = arith.constant 0 : i32
    return %arg0, %c0_i32, %c0_i32_0 : i32, i32, i32
  }
}

</mosaic_0001>

<llo_original>
// kernel: tpu_custom_call.1
$region0: #{tpu_custom_call.1}
  #allocation0 [shape = 'u32[]', space=smem, size = 0x4, offset = 0x4, fixed_abs, tag = 'smem constant byte address 0x4 - core index']
  #allocation1 [shape = 'u32[144,128]{1,0:T(1,128)}', space=vmem, size = 0x12000, scoped, tag = 'internal scratch']
  #allocation2 [shape = 'f32[1,128]{1,0:T(1,128)}', space=vmem, size = 0x200, scoped, tag = 'scratch operand']
  %s0 = inlined_call_operand.vmem [shape: bf16[4,256,9], index: 0, kind: input, shape index: {}]
  %s1 = inlined_call_operand.vmem [shape: bf16[9,128], index: 1, kind: input, shape index: {}]
  %s2 = inlined_call_operand.vmem [shape: f32[1,128], index: 2, kind: input, shape index: {}]
  %s3 = inlined_call_operand.hbm [shape: bf16[128,1920], index: 3, kind: input, shape index: {}]
  %s4 = inlined_call_operand.vmem [shape: f32[1,1920], index: 4, kind: input, shape index: {}]
  %s5 = inlined_call_operand.vmem [shape: bf16[4,1,1920], index: 5, kind: output, shape index: {}]
  %s6 = sld [smem:[#allocation0]]
  $region65: #{tpu_custom_call.1} parent=0
    _
  %s8 = ssub.s32 1, %s6
  %s9 = scalar_select 0, %s8, %s6
  $region1: #{tpu_custom_call.1} parent=0
    #allocation3 [shape = 'u8[491520]{0}', space=vmem, size = 0x78000, scoped, tag = 'input window, operand 3, single buffered']
    #allocation4 [shape = 's32[2]{0}', space=sflag, size = 0x8, scoped, tag = 'scoped memory for tpu_custom_call.1']
    %10 = vsyncpa [#allocation4], 0
    loop: start=0, step=1, limit=10
    $region2: #{tpu_custom_call.1} parent=1 // loop_pre_header
      _
    $region3: #{tpu_custom_call.1} parent=1 // loop_header
      %s12 = sphi 0, %s16
      %p13 = scmp.ge.s32.totalorder %s12, 10
      %s19 = sphi 0, %s31
      %s20 = sphi 0, %s27
      %s21 = sphi 0, %s19
      %s22 = sphi 0, %s20
      %s23 = sphi 0, %s21
      %s24 = sphi 0, %s22
      %s36 = sphi 0, %s38
      %s39 = sphi 0, %s36
      %s40 = sphi 0, %s39
      %s56 = sphi 0, %s40
      %s60 = sphi 0, %s60
      %s62 = sphi 0, %s60
      %s63 = sphi 0, %s62
      %s77 = sphi 0, %s63
      %s81 = sphi 0, %s81
      %s83 = sphi 0, %s81
      %s84 = sphi 0, %s83
      %s98 = sphi 0, %s84
      %s102 = sphi 0, %s102
      %s104 = sphi 0, %s102
      %s105 = sphi 0, %s104
      %s119 = sphi 0, %s105
      %s123 = sphi 0, %s123
      %s125 = sphi 0, %s123
      %s126 = sphi 0, %s125
      %s140 = sphi 0, %s126
      %s146 = sphi 0, %s148
      %s149 = sphi 0, %s146
      %s150 = sphi 0, %s149
      %s166 = sphi 0, %s150
    $region4: #{tpu_custom_call.1} parent=1 // loop_header_branch
      %15 = sbr.rel (%p13) target = $region8
    $region5: #{tpu_custom_call.1} parent=1 // loop_body
      %s17 = ssub.s32 %s12, 1
      %s18 = ssub.s32 %s12, 2
      %s25 = sadd.s32 1, %s20
      %p26 = scmp.ge.s32.totalorder %s25, 2
      %s27 = scalar_select %p26, 0, %s25
      %s28 = sadd.s32 1, %s19
      %s29 = scalar_select %p26, %s28, %s19
      %p30 = scmp.ge.s32.totalorder %s29, 4
      %s31 = scalar_select %p30, 0, %s29
      %s32 = ssub.s32 %s19, %s31
      %s33 = ssub.s32 %s20, %s27
      %s34 = sor.u32 %s32, %s33
      %p35 = scmp.eq.s32.totalorder %s34, 0
      %s37 = sadd.s32 %s36, 1
      %s38 = scalar_select %p35, %s36, %s37
      %p41 = pneg %p35
      %p42 = scmp.eq.s32.totalorder %s12, 7
      %p43 = por %p41, %p42
      %p44 = scmp.ne.s32.totalorder %s36, %s39
      %p45 = scmp.eq.s32.totalorder %s12, 0
      %p46 = por %p44, %p45
      %p47 = scmp.ne.s32.totalorder %s36, %s39
      %p48 = scmp.eq.s32.totalorder %s17, 7
      %p49 = por %p47, %p48
      %p50 = scmp.ne.s32.totalorder %s39, %s40
      %p51 = scmp.eq.s32.totalorder %s17, 0
      %p52 = por %p50, %p51
      %p53 = scmp.ne.s32.totalorder %s39, %s40
      %p54 = scmp.eq.s32.totalorder %s18, 7
      %p55 = por %p53, %p54
      %p57 = scmp.ne.s32.totalorder %s40, %s56
      %p58 = scmp.eq.s32.totalorder %s18, 0
      %p59 = por %p57, %p58
      %s61 = sadd.s32 %s60, 1
      %p64 = scmp.eq.s32.totalorder %s12, 7
      %p65 = scmp.ne.s32.totalorder %s60, %s62
      %p66 = scmp.eq.s32.totalorder %s12, 0
      %p67 = por %p65, %p66
      %p68 = scmp.ne.s32.totalorder %s60, %s62
      %p69 = scmp.eq.s32.totalorder %s17, 7
      %p70 = por %p68, %p69
      %p71 = scmp.ne.s32.totalorder %s62, %s63
      %p72 = scmp.eq.s32.totalorder %s17, 0
      %p73 = por %p71, %p72
      %p74 = scmp.ne.s32.totalorder %s62, %s63
      %p75 = scmp.eq.s32.totalorder %s18, 7
      %p76 = por %p74, %p75
      %p78 = scmp.ne.s32.totalorder %s63, %s77
      %p79 = scmp.eq.s32.totalorder %s18, 0
      %p80 = por %p78, %p79
      %s82 = sadd.s32 %s81, 1
      %p85 = scmp.eq.s32.totalorder %s12, 7
      %p86 = scmp.ne.s32.totalorder %s81, %s83
      %p87 = scmp.eq.s32.totalorder %s12, 0
      %p88 = por %p86, %p87
      %p89 = scmp.ne.s32.totalorder %s81, %s83
      %p90 = scmp.eq.s32.totalorder %s17, 7
      %p91 = por %p89, %p90
      %p92 = scmp.ne.s32.totalorder %s83, %s84
      %p93 = scmp.eq.s32.totalorder %s17, 0
      %p94 = por %p92, %p93
      %p95 = scmp.ne.s32.totalorder %s83, %s84
      %p96 = scmp.eq.s32.totalorder %s18, 7
      %p97 = por %p95, %p96
      %p99 = scmp.ne.s32.totalorder %s84, %s98
      %p100 = scmp.eq.s32.totalorder %s18, 0
      %p101 = por %p99, %p100
      %s103 = sadd.s32 %s102, 1
      %p106 = scmp.eq.s32.totalorder %s12, 7
      %p107 = scmp.ne.s32.totalorder %s102, %s104
      %p108 = scmp.eq.s32.totalorder %s12, 0
      %p109 = por %p107, %p108
      %p110 = scmp.ne.s32.totalorder %s102, %s104
      %p111 = scmp.eq.s32.totalorder %s17, 7
      %p112 = por %p110, %p111
      %p113 = scmp.ne.s32.totalorder %s104, %s105
      %p114 = scmp.eq.s32.totalorder %s17, 0
      %p115 = por %p113, %p114
      %p116 = scmp.ne.s32.totalorder %s104, %s105
      %p117 = scmp.eq.s32.totalorder %s18, 7
      %p118 = por %p116, %p117
      %p120 = scmp.ne.s32.totalorder %s105, %s119
      %p121 = scmp.eq.s32.totalorder %s18, 0
      %p122 = por %p120, %p121
      %s124 = sadd.s32 %s123, 1
      %p127 = scmp.eq.s32.totalorder %s12, 7
      %p128 = scmp.ne.s32.totalorder %s123, %s125
      %p129 = scmp.eq.s32.totalorder %s12, 0
      %p130 = por %p128, %p129
      %p131 = scmp.ne.s32.totalorder %s123, %s125
      %p132 = scmp.eq.s32.totalorder %s17, 7
      %p133 = por %p131, %p132
      %p134 = scmp.ne.s32.totalorder %s125, %s126
      %p135 = scmp.eq.s32.totalorder %s17, 0
      %p136 = por %p134, %p135
      %p137 = scmp.ne.s32.totalorder %s125, %s126
      %p138 = scmp.eq.s32.totalorder %s18, 7
      %p139 = por %p137, %p138
      %p141 = scmp.ne.s32.totalorder %s126, %s140
      %p142 = scmp.eq.s32.totalorder %s18, 0
      %p143 = por %p141, %p142
      %s144 = ssub.s32 %s19, %s31
      %p145 = scmp.eq.s32.totalorder %s144, 0
      %s147 = sadd.s32 %s146, 1
      %s148 = scalar_select %p145, %s146, %s147
      %p151 = pneg %p145
      %p152 = scmp.eq.s32.totalorder %s12, 7
      %p153 = por %p151, %p152
      %p154 = scmp.ne.s32.totalorder %s146, %s149
      %p155 = scmp.eq.s32.totalorder %s12, 0
      %p156 = por %p154, %p155
      %p157 = scmp.ne.s32.totalorder %s146, %s149
      %p158 = scmp.eq.s32.totalorder %s17, 7
      %p159 = por %p157, %p158
      %p160 = scmp.ne.s32.totalorder %s149, %s150
      %p161 = scmp.eq.s32.totalorder %s17, 0
      %p162 = por %p160, %p161
      %p163 = scmp.ne.s32.totalorder %s149, %s150
      %p164 = scmp.eq.s32.totalorder %s18, 7
      %p165 = por %p163, %p164
      %p167 = scmp.ne.s32.totalorder %s150, %s166
      %p168 = scmp.eq.s32.totalorder %s18, 0
      %p169 = por %p167, %p168
      %p170 = scmp.le.s32.totalorder 1, %s12
      %p171 = scmp.lt.s32.totalorder %s12, 9
      %p172 = pnand %p170, %p171
      %p173 = pneg %p172
      // Predicated region
      $region9: #{tpu_custom_call.1} parent=5 // pred_check
        _
      $region10: #{tpu_custom_call.1} parent=5 // pred_check_branch
        %175 = sbr.rel (%p172) target = $region12
      $region11: #{tpu_custom_call.1} parent=5 // pred_region
        %s176 = ssub.s32 %s12, 1
        // Predicated region
        $region13: #{tpu_custom_call.1} parent=11 // pred_check
          %p177 = pneg %p73
        $region14: #{tpu_custom_call.1} parent=11 // pred_check_branch
          %179 = sbr.rel (%p177) target = $region16
        $region15: #{tpu_custom_call.1} parent=11 // pred_region
          _
        $region16: #{tpu_custom_call.1} parent=11 // pred_fallthru
          _
        // Predicated region
        $region17: #{tpu_custom_call.1} parent=11 // pred_check
          %p180 = pneg %p94
        $region18: #{tpu_custom_call.1} parent=11 // pred_check_branch
          %182 = sbr.rel (%p180) target = $region20
        $region19: #{tpu_custom_call.1} parent=11 // pred_region
          _
        $region20: #{tpu_custom_call.1} parent=11 // pred_fallthru
          _
        // Predicated region
        $region21: #{tpu_custom_call.1} parent=11 // pred_check
          %p183 = pneg %p115
        $region22: #{tpu_custom_call.1} parent=11 // pred_check_branch
          %185 = sbr.rel (%p183) target = $region24
        $region23: #{tpu_custom_call.1} parent=11 // pred_region
          %s187 = ssub.s32 15360, 15360
          %188 = vsyncadd [#allocation4], %s187
          %s189 = sshll.u32 [#allocation3], 4
          %s190 = int_to_ptr.vmem [resolvable:$true] %s189
          %195 = dma.hbm_to_vmem [thread:$0]  %s3, 15360, %s190, [#allocation4], 960, 960, 60
        $region24: #{tpu_custom_call.1} parent=11 // pred_fallthru
          _
        // Predicated region
        $region25: #{tpu_custom_call.1} parent=11 // pred_check
          %p196 = pneg %p136
        $region26: #{tpu_custom_call.1} parent=11 // pred_check_branch
          %198 = sbr.rel (%p196) target = $region28
        $region27: #{tpu_custom_call.1} parent=11 // pred_region
          _
        $region28: #{tpu_custom_call.1} parent=11 // pred_fallthru
          _
      $region12: #{tpu_custom_call.1} parent=5 // pred_fallthru
        _
      %p199 = scmp.lt.s32.totalorder %s12, 8
      // Predicated region
      $region29: #{tpu_custom_call.1} parent=5 // pred_check
        %p200 = pneg %p199
      $region30: #{tpu_custom_call.1} parent=5 // pred_check_branch
        %202 = sbr.rel (%p200) target = $region32
      $region31: #{tpu_custom_call.1} parent=5 // pred_region
        // Predicated region
        $region33: #{tpu_custom_call.1} parent=31 // pred_check
          %p203 = pneg %p46
        $region34: #{tpu_custom_call.1} parent=31 // pred_check_branch
          %205 = sbr.rel (%p203) target = $region36
        $region35: #{tpu_custom_call.1} parent=31 // pred_region
          %s206 = smul.u32 16, %s20
          %p207 = scmp.lt.s32.totalorder %s19, 3
          %s208 = scalar_select %p207, %s19, 3
          %p209 = scmp.lt.s32.totalorder %s206, 31
          %s210 = scalar_select %p209, %s206, 31
          %s211 = smul.addr %s208, 32
          %s212 = sadd.s32 %s210, %s211
          %s213 = smul.addr %s212, 4
          %s214 = scalar_lea.vmem %s0, %s213
          %s215 = smul.u32 16, %s20
        $region36: #{tpu_custom_call.1} parent=31 // pred_fallthru
          _
      $region32: #{tpu_custom_call.1} parent=5 // pred_fallthru
        _
      %p216 = scmp.le.s32.totalorder 1, %s12
      %p217 = scmp.lt.s32.totalorder %s12, 9
      %p218 = pnand %p216, %p217
      %p219 = pneg %p218
      // Predicated region
      $region37: #{tpu_custom_call.1} parent=5 // pred_check
        _
      $region38: #{tpu_custom_call.1} parent=5 // pred_check_branch
        %221 = sbr.rel (%p218) target = $region40
      $region39: #{tpu_custom_call.1} parent=5 // pred_region
        %s222 = ssub.s32 %s12, 1
        // Predicated region
        $region41: #{tpu_custom_call.1} parent=39 // pred_check
          %p223 = pneg %p115
        $region42: #{tpu_custom_call.1} parent=39 // pred_check_branch
          %225 = sbr.rel (%p223) target = $region44
        $region43: #{tpu_custom_call.1} parent=39 // pred_region
          %226 = dma.done [#allocation4], 15360
        $region44: #{tpu_custom_call.1} parent=39 // pred_fallthru
          _
        %s227 = smul.u32 16, %s22
        %p228 = scmp.lt.s32.totalorder %s21, 3
        %s229 = scalar_select %p228, %s21, 3
        %p230 = scmp.lt.s32.totalorder %s227, 31
        %s231 = scalar_select %p230, %s227, 31
        %s232 = smul.addr %s229, 32
        %s233 = sadd.s32 %s231, %s232
        %s234 = smul.addr %s233, 4
        %s235 = scalar_lea.vmem %s0, %s234
        %p236 = pneg %p52
        %p237 = pneg %p49
        %p238 = pneg %p73
        %p239 = pneg %p70
        %p240 = pneg %p94
        %p241 = pneg %p91
        %p242 = pneg %p115
        %p243 = pneg %p112
        %p244 = pneg %p136
        %p245 = pneg %p133
        %p246 = pneg %p162
        %p247 = pneg %p159
        %p248 = scmp.lt.s32.totalorder %s21, 3
        %s249 = scalar_select %p248, %s21, 3
        %s250 = smul.addr %s249, 15
        %s251 = scalar_lea.vmem %s5, %s250
        %s252 = smul.u32 16, %s22
        %p253 = scmp.lt.s32.totalorder %s21, 3
        %s254 = scalar_select %p253, %s21, 3
        %p255 = scmp.lt.s32.totalorder %s252, 31
        %s256 = scalar_select %p255, %s252, 31
        %s257 = smul.addr %s254, 32
        %s258 = sadd.s32 %s256, %s257
        %s259 = smul.addr %s258, 4
        %s260 = scalar_lea.vmem %s0, %s259
        %s261 = smul.u32 16, %s22
        %p262 = scmp.lt.s32.totalorder %s21, 3
        %s263 = scalar_select %p262, %s21, 3
        %s264 = smul.addr %s263, 15
        %s265 = scalar_lea.vmem %s5, %s264
        %p267 = scmp.eq.s32.totalorder %s22, 0
        // Predicated region
        $region45: #{tpu_custom_call.1} parent=39 // pred_check
          %p268 = pneg %p267
        $region46: #{tpu_custom_call.1} parent=39 // pred_check_branch
          %270 = sbr.rel (%p268) target = $region48
        $region47: #{tpu_custom_call.1} parent=39 // pred_region
          %271 = vst [vmem:[#allocation2] sm:$0x1] 0.0
        $region48: #{tpu_custom_call.1} parent=39 // pred_fallthru
          _
        %v272 = vld [vmem:[%s260] sm:$0xf]
        %v273 = vld [vmem:[%s260 + $0x4] sm:$0xf]
        %v274 = vld [vmem:[%s260 + $0x8] sm:$0xf]
        %v275 = vld [vmem:[%s260 + $0xc] sm:$0xf]
        %v276 = vld [vmem:[%s260 + $0x10] sm:$0xf]
        %v277 = vld [vmem:[%s260 + $0x14] sm:$0xf]
        %v278 = vld [vmem:[%s260 + $0x18] sm:$0xf]
        %v279 = vld [vmem:[%s260 + $0x1c] sm:$0xf]
        %v280 = vld [vmem:[%s260 + $0x20] sm:$0xf]
        %v281 = vld [vmem:[%s260 + $0x24] sm:$0xf]
        %v282 = vld [vmem:[%s260 + $0x28] sm:$0xf]
        %v283 = vld [vmem:[%s260 + $0x2c] sm:$0xf]
        %v284 = vld [vmem:[%s260 + $0x30] sm:$0xf]
        %v285 = vld [vmem:[%s260 + $0x34] sm:$0xf]
        %v286 = vld [vmem:[%s260 + $0x38] sm:$0xf]
        %v287 = vld [vmem:[%s260 + $0x3c] sm:$0xf]
        %v288 = vld [vmem:[%s1] sm:$0xf]
        %v289 = vld [vmem:[%s1 + $0x4] sm:$0x1]
        %v290 = vld [vmem:[%s2] sm:$0x1]
        %v292 = vlaneseq
        %v293 = vshrl.u32 %v292, 7
        %v294 = vsub.s32 0, %v293
        %v295 = vrot.slane %v290, %v294
        %v313 = vunpack.c.l.b16 %v272
        %v314 = vunpack.c.l.b16 %v273
        %v315 = vunpack.c.l.b16 %v274
        %v316 = vunpack.c.l.b16 %v275
        %v317 = vunpack.c.l.b16 %v276
        %v318 = vunpack.c.l.b16 %v277
        %v319 = vunpack.c.l.b16 %v278
        %v320 = vunpack.c.l.b16 %v279
        %v321 = vunpack.c.l.b16 %v280
        %v322 = vunpack.c.l.b16 %v281
        %v323 = vunpack.c.l.b16 %v282
        %v324 = vunpack.c.l.b16 %v283
        %v325 = vunpack.c.l.b16 %v284
        %v326 = vunpack.c.l.b16 %v285
        %v327 = vunpack.c.l.b16 %v286
        %v328 = vunpack.c.l.b16 %v287
        %v329 = vpack.c.b16 %v314, %v313
        %v330 = vpack.c.b16 %v316, %v315
        %v331 = vpack.c.b16 %v318, %v317
        %v332 = vpack.c.b16 %v320, %v319
        %v333 = vpack.c.b16 %v322, %v321
        %v334 = vpack.c.b16 %v324, %v323
        %v335 = vpack.c.b16 %v326, %v325
        %v336 = vpack.c.b16 %v328, %v327
        %v339 = vunpack.c.l.b16 %v288
        %v340 = vunpack.c.l.b16 %v289
        %v341 = vpack.c.b16 %v340, %v339
        %vm342 = vcmask 72704
        %v344 = vsel %vm342, %v329, 0
        %v347 = vsel %vm342, %v330, 0
        %v350 = vsel %vm342, %v331, 0
        %v353 = vsel %vm342, %v332, 0
        %v356 = vsel %vm342, %v333, 0
        %v359 = vsel %vm342, %v334, 0
        %v362 = vsel %vm342, %v335, 0
        %v365 = vsel %vm342, %v336, 0
        %vm367 = vcmask 1043456
        %vm368 = vcmask 1044480
        %v369 = vsel %vm367, 4294967295, 65535
        %v370 = vsel %vm368, %v369, 0
        %v372 = vand.u32 %v341, %v370
        %374 = vmatprep.subr.bf16.mxu0 0
        %375 = vmatpush1.bf16.msra.mxu0 %v372
        %376 = vmatprep.subr.bf16.mxu0 0
        %377 = vmatpush1.bf16.msra.mxu0 0
        %378 = vmatprep.subr.bf16.mxu0 0
        %379 = vmatpush1.bf16.msra.mxu0 0
        %380 = vmatprep.subr.bf16.mxu0 0
        %381 = vmatpush1.bf16.msra.mxu0 0
        %382 = vmatprep.subr.bf16.mxu0 0
        %383 = vmatpush1.bf16.msra.mxu0 0
        %384 = vmatprep.subr.bf16.mxu0 0
        %385 = vmatpush1.bf16.msra.mxu0 0
        %386 = vmatprep.subr.bf16.mxu0 0
        %387 = vmatpush1.bf16.msra.mxu0 0
        %388 = vmatprep.subr.bf16.mxu0 0
        %389 = vmatpush1.bf16.msra.mxu0 0
        %390 = vmatprep.subr.bf16.mxu0 0
        %391 = vmatpush1.bf16.msra.mxu0 0
        %392 = vmatprep.subr.bf16.mxu0 0
        %393 = vmatpush1.bf16.msra.mxu0 0
        %394 = vmatprep.subr.bf16.mxu0 0
        %395 = vmatpush1.bf16.msra.mxu0 0
        %396 = vmatprep.subr.bf16.mxu0 0
        %397 = vmatpush1.bf16.msra.mxu0 0
        %398 = vmatprep.subr.bf16.mxu0 0
        %399 = vmatpush1.bf16.msra.mxu0 0
        %400 = vmatprep.subr.bf16.mxu0 0
        %401 = vmatpush1.bf16.msra.mxu0 0
        %402 = vmatprep.subr.bf16.mxu0 0
        %403 = vmatpush1.bf16.msra.mxu0 0
        %404 = vmatprep.subr.bf16.mxu0 0
        %405 = vmatpush1.bf16.msra.mxu0 0
        %406 = vmatprep.mubr.bf16.mxu0 0
        %407 = vmatmul.mubr.bf16.gmra.mrb[0].mxu0 %v344
        %v408 = vpop.f32.mrb[0].mxu0
        %v409 = vadd.f32 %v295, %v408
        %v410 = vpop.f32.mrb[0].mxu0
        %v411 = vpop.f32.mrb[0].mxu0
        %v412 = vadd.f32 %v295, %v411
        %v413 = vpop.f32.mrb[0].mxu0
        %414 = vmatprep.mubr.bf16.mxu0 0
        %415 = vmatmul.mubr.bf16.gmra.mrb[0].mxu0 %v347
        %v416 = vpop.f32.mrb[0].mxu0
        %v417 = vadd.f32 %v295, %v416
        %v418 = vpop.f32.mrb[0].mxu0
        %v419 = vpop.f32.mrb[0].mxu0
        %v420 = vadd.f32 %v295, %v419
        %v421 = vpop.f32.mrb[0].mxu0
        %422 = vmatprep.mubr.bf16.mxu0 0
        %423 = vmatmul.mubr.bf16.gmra.mrb[0].mxu0 %v350
        %v424 = vpop.f32.mrb[0].mxu0
        %v425 = vadd.f32 %v295, %v424
        %v426 = vpop.f32.mrb[0].mxu0
        %v427 = vpop.f32.mrb[0].mxu0
        %v428 = vadd.f32 %v295, %v427
        %v429 = vpop.f32.mrb[0].mxu0
        %430 = vmatprep.mubr.bf16.mxu0 0
        %431 = vmatmul.mubr.bf16.gmra.mrb[0].mxu0 %v353
        %v432 = vpop.f32.mrb[0].mxu0
        %v433 = vadd.f32 %v295, %v432
        %v434 = vpop.f32.mrb[0].mxu0
        %v435 = vpop.f32.mrb[0].mxu0
        %v436 = vadd.f32 %v295, %v435
        %v437 = vpop.f32.mrb[0].mxu0
        %438 = vmatprep.mubr.bf16.mxu0 0
        %439 = vmatmul.mubr.bf16.gmra.mrb[0].mxu0 %v356
        %v440 = vpop.f32.mrb[0].mxu0
        %v441 = vadd.f32 %v295, %v440
        %v442 = vpop.f32.mrb[0].mxu0
        %v443 = vpop.f32.mrb[0].mxu0
        %v444 = vadd.f32 %v295, %v443
        %v445 = vpop.f32.mrb[0].mxu0
        %446 = vmatprep.mubr.bf16.mxu0 0
        %447 = vmatmul.mubr.bf16.gmra.mrb[0].mxu0 %v359
        %v448 = vpop.f32.mrb[0].mxu0
        %v449 = vadd.f32 %v295, %v448
        %v450 = vpop.f32.mrb[0].mxu0
        %v451 = vpop.f32.mrb[0].mxu0
        %v452 = vadd.f32 %v295, %v451
        %v453 = vpop.f32.mrb[0].mxu0
        %454 = vmatprep.mubr.bf16.mxu0 0
        %455 = vmatmul.mubr.bf16.gmra.mrb[0].mxu0 %v362
        %v456 = vpop.f32.mrb[0].mxu0
        %v457 = vadd.f32 %v295, %v456
        %v458 = vpop.f32.mrb[0].mxu0
        %v459 = vpop.f32.mrb[0].mxu0
        %v460 = vadd.f32 %v295, %v459
        %v461 = vpop.f32.mrb[0].mxu0
        %462 = vmatprep.mubr.bf16.mxu0 0
        %463 = vmatmul.mubr.bf16.gmra.mrb[0].mxu0 %v365
        %v464 = vpop.f32.mrb[0].mxu0
        %v465 = vadd.f32 %v295, %v464
        %v466 = vpop.f32.mrb[0].mxu0
        %v467 = vpop.f32.mrb[0].mxu0
        %v468 = vadd.f32 %v295, %v467
        %v469 = vpop.f32.mrb[0].mxu0
        %470 = vdwg.mxu0
        %v471 = vlaneseq
        %v472 = vand.u32 %v471, 127
        %vm473 = vcmp.lt.s32.totalorder %v472, 8
        %v474 = vmax.f32 %v409, 0.0
        %v475 = vmax.f32 %v412, 0.0
        %v476 = vmax.f32 %v417, 0.0
        %v477 = vmax.f32 %v420, 0.0
        %v478 = vmax.f32 %v425, 0.0
        %v479 = vmax.f32 %v428, 0.0
        %v480 = vmax.f32 %v433, 0.0
        %v481 = vmax.f32 %v436, 0.0
        %v482 = vmax.f32 %v441, 0.0
        %v483 = vmax.f32 %v444, 0.0
        %v484 = vmax.f32 %v449, 0.0
        %v485 = vmax.f32 %v452, 0.0
        %v486 = vmax.f32 %v457, 0.0
        %v487 = vmax.f32 %v460, 0.0
        %v488 = vmax.f32 %v465, 0.0
        %v489 = vmax.f32 %v468, 0.0
        %v490 = vxor.u32 %v409, 2147483648
        %v491 = vxor.u32 %v412, 2147483648
        %v492 = vxor.u32 %v417, 2147483648
        %v493 = vxor.u32 %v420, 2147483648
        %v494 = vxor.u32 %v425, 2147483648
        %v495 = vxor.u32 %v428, 2147483648
        %v496 = vxor.u32 %v433, 2147483648
        %v497 = vxor.u32 %v436, 2147483648
        %v498 = vxor.u32 %v441, 2147483648
        %v499 = vxor.u32 %v444, 2147483648
        %v500 = vxor.u32 %v449, 2147483648
        %v501 = vxor.u32 %v452, 2147483648
        %v502 = vxor.u32 %v457, 2147483648
        %v503 = vxor.u32 %v460, 2147483648
        %v504 = vxor.u32 %v465, 2147483648
        %v505 = vxor.u32 %v468, 2147483648
        %v506 = vmul.f32 %v490, 1.442695
        %v507 = vpow.pop %v506
        %v508 = vmul.f32 %v491, 1.442695
        %v509 = vpow.pop %v508
        %v510 = vmul.f32 %v492, 1.442695
        %v511 = vpow.pop %v510
        %v512 = vmul.f32 %v493, 1.442695
        %v513 = vpow.pop %v512
        %v514 = vmul.f32 %v494, 1.442695
        %v515 = vpow.pop %v514
        %v516 = vmul.f32 %v495, 1.442695
        %v517 = vpow.pop %v516
        %v518 = vmul.f32 %v496, 1.442695
        %v519 = vpow.pop %v518
        %v520 = vmul.f32 %v497, 1.442695
        %v521 = vpow.pop %v520
        %v522 = vmul.f32 %v498, 1.442695
        %v523 = vpow.pop %v522
        %v524 = vmul.f32 %v499, 1.442695
        %v525 = vpow.pop %v524
        %v526 = vmul.f32 %v500, 1.442695
        %v527 = vpow.pop %v526
        %v528 = vmul.f32 %v501, 1.442695
        %v529 = vpow.pop %v528
        %v530 = vmul.f32 %v502, 1.442695
        %v531 = vpow.pop %v530
        %v532 = vmul.f32 %v503, 1.442695
        %v533 = vpow.pop %v532
        %v534 = vmul.f32 %v504, 1.442695
        %v535 = vpow.pop %v534
        %v536 = vmul.f32 %v505, 1.442695
        %v537 = vpow.pop %v536
        %v538 = vadd.f32 %v507, 1.0
        %v539 = vadd.f32 %v509, 1.0
        %v540 = vadd.f32 %v511, 1.0
        %v541 = vadd.f32 %v513, 1.0
        %v542 = vadd.f32 %v515, 1.0
        %v543 = vadd.f32 %v517, 1.0
        %v544 = vadd.f32 %v519, 1.0
        %v545 = vadd.f32 %v521, 1.0
        %v546 = vadd.f32 %v523, 1.0
        %v547 = vadd.f32 %v525, 1.0
        %v548 = vadd.f32 %v527, 1.0
        %v549 = vadd.f32 %v529, 1.0
        %v550 = vadd.f32 %v531, 1.0
        %v551 = vadd.f32 %v533, 1.0
        %v552 = vadd.f32 %v535, 1.0
        %v553 = vadd.f32 %v537, 1.0
        %v554 = vrcp.pop %v538
        %v555 = vmul.f32 1.0, %v554
        %v556 = vrcp.pop %v539
        %v557 = vmul.f32 1.0, %v556
        %v558 = vrcp.pop %v540
        %v559 = vmul.f32 1.0, %v558
        %v560 = vrcp.pop %v541
        %v561 = vmul.f32 1.0, %v560
        %v562 = vrcp.pop %v542
        %v563 = vmul.f32 1.0, %v562
        %v564 = vrcp.pop %v543
        %v565 = vmul.f32 1.0, %v564
        %v566 = vrcp.pop %v544
        %v567 = vmul.f32 1.0, %v566
        %v568 = vrcp.pop %v545
        %v569 = vmul.f32 1.0, %v568
        %v570 = vrcp.pop %v546
        %v571 = vmul.f32 1.0, %v570
        %v572 = vrcp.pop %v547
        %v573 = vmul.f32 1.0, %v572
        %v574 = vrcp.pop %v548
        %v575 = vmul.f32 1.0, %v574
        %v576 = vrcp.pop %v549
        %v577 = vmul.f32 1.0, %v576
        %v578 = vrcp.pop %v550
        %v579 = vmul.f32 1.0, %v578
        %v580 = vrcp.pop %v551
        %v581 = vmul.f32 1.0, %v580
        %v582 = vrcp.pop %v552
        %v583 = vmul.f32 1.0, %v582
        %v584 = vrcp.pop %v553
        %v585 = vmul.f32 1.0, %v584
        %v586 = vmul.f32 %v409, %v555
        %v587 = vmul.f32 %v412, %v557
        %v588 = vmul.f32 %v417, %v559
        %v589 = vmul.f32 %v420, %v561
        %v590 = vmul.f32 %v425, %v563
        %v591 = vmul.f32 %v428, %v565
        %v592 = vmul.f32 %v433, %v567
        %v593 = vmul.f32 %v436, %v569
        %v594 = vmul.f32 %v441, %v571
        %v595 = vmul.f32 %v444, %v573
        %v596 = vmul.f32 %v449, %v575
        %v597 = vmul.f32 %v452, %v577
        %v598 = vmul.f32 %v457, %v579
        %v599 = vmul.f32 %v460, %v581
        %v600 = vmul.f32 %v465, %v583
        %v601 = vmul.f32 %v468, %v585
        %v602 = vsel %vm473, %v474, %v586
        %v603 = vsel %vm473, %v475, %v587
        %v604 = vsel %vm473, %v476, %v588
        %v605 = vsel %vm473, %v477, %v589
        %v606 = vsel %vm473, %v478, %v590
        %v607 = vsel %vm473, %v479, %v591
        %v608 = vsel %vm473, %v480, %v592
        %v609 = vsel %vm473, %v481, %v593
        %v610 = vsel %vm473, %v482, %v594
        %v611 = vsel %vm473, %v483, %v595
        %v612 = vsel %vm473, %v484, %v596
        %v613 = vsel %vm473, %v485, %v597
        %v614 = vsel %vm473, %v486, %v598
        %v615 = vsel %vm473, %v487, %v599
        %v616 = vsel %vm473, %v488, %v600
        %v617 = vsel %vm473, %v489, %v601
        %v618 = vld [vmem:[#allocation2] sm:$0x1]
        %v619 = vadd.f32 %v602, %v603
        %v620 = vadd.f32 %v619, %v604
        %v621 = vadd.f32 %v620, %v605
        %v622 = vadd.f32 %v621, %v606
        %v623 = vadd.f32 %v622, %v607
        %v624 = vadd.f32 %v623, %v608
        %v625 = vadd.f32 %v624, %v609
        %v626 = vadd.f32 %v625, %v610
        %v627 = vadd.f32 %v626, %v611
        %v628 = vadd.f32 %v627, %v612
        %v629 = vadd.f32 %v628, %v613
        %v630 = vadd.f32 %v629, %v614
        %v631 = vadd.f32 %v630, %v615
        %v632 = vadd.f32 %v631, %v616
        %v633 = vadd.f32 %v632, %v617
        %v634 = vrot.slane %v633, 4
        %v635 = vadd.f32 %v633, %v634
        %v636 = vrot.slane %v635, 2
        %v637 = vadd.f32 %v635, %v636
        %v638 = vrot.slane %v637, 1
        %v639 = vadd.f32 %v637, %v638
        %v640 = vadd.f32 %v618, %v639
        %641 = vst [vmem:[#allocation2] sm:$0x1] %v640
        %p642 = scmp.eq.s32.totalorder %s22, 1
        // Predicated region
        $region49: #{tpu_custom_call.1} parent=39 // pred_check
          %p643 = pneg %p642
        $region50: #{tpu_custom_call.1} parent=39 // pred_check_branch
          %645 = sbr.rel (%p643) target = $region52
        $region51: #{tpu_custom_call.1} parent=39 // pred_region
          %v646 = vld [vmem:[#allocation2] sm:$0x1]
          %v647 = vmul.f32 %v646, 0.00390625
          %v648 = vpack.c.bf16 %v647, %v647
          %v649 = vld [vmem:[#allocation3] sm:$0xff]
          %v650 = vld [vmem:[#allocation3 + $0x8] sm:$0xff]
          %v651 = vld [vmem:[#allocation3 + $0x10] sm:$0xff]
          %v652 = vld [vmem:[#allocation3 + $0x18] sm:$0xff]
          %v653 = vld [vmem:[#allocation3 + $0x20] sm:$0xff]
          %v654 = vld [vmem:[#allocation3 + $0x28] sm:$0xff]
          %v655 = vld [vmem:[#allocation3 + $0x30] sm:$0xff]
          %v656 = vld [vmem:[#allocation3 + $0x38] sm:$0xf]
          %v657 = vld [vmem:[#allocation3 + $0x3c] sm:$0xff]
          %v658 = vld [vmem:[#allocation3 + $0x44] sm:$0xff]
          %v659 = vld [vmem:[#allocation3 + $0x4c] sm:$0xff]
          %v660 = vld [vmem:[#allocation3 + $0x54] sm:$0xff]
          %v661 = vld [vmem:[#allocation3 + $0x5c] sm:$0xff]
          %v662 = vld [vmem:[#allocation3 + $0x64] sm:$0xff]
          %v663 = vld [vmem:[#allocation3 + $0x6c] sm:$0xff]
          %v664 = vld [vmem:[#allocation3 + $0x74] sm:$0xf]
          %v665 = vld [vmem:[#allocation3 + $0x78] sm:$0xff]
          %v666 = vld [vmem:[#allocation3 + $0x80] sm:$0xff]
          %v667 = vld [vmem:[#allocation3 + $0x88] sm:$0xff]
          %v668 = vld [vmem:[#allocation3 + $0x90] sm:$0xff]
          %v669 = vld [vmem:[#allocation3 + $0x98] sm:$0xff]
          %v670 = vld [vmem:[#allocation3 + $0xa0] sm:$0xff]
          %v671 = vld [vmem:[#allocation3 + $0xa8] sm:$0xff]
          %v672 = vld [vmem:[#allocation3 + $0xb0] sm:$0xf]
          %v673 = vld [vmem:[#allocation3 + $0xb4] sm:$0xff]
          %v674 = vld [vmem:[#allocation3 + $0xbc] sm:$0xff]
          %v675 = vld [vmem:[#allocation3 + $0xc4] sm:$0xff]
          %v676 = vld [vmem:[#allocation3 + $0xcc] sm:$0xff]
          %v677 = vld [vmem:[#allocation3 + $0xd4] sm:$0xff]
          %v678 = vld [vmem:[#allocation3 + $0xdc] sm:$0xff]
          %v679 = vld [vmem:[#allocation3 + $0xe4] sm:$0xff]
          %v680 = vld [vmem:[#allocation3 + $0xec] sm:$0xf]
          %v681 = vld [vmem:[#allocation3 + $0xf0] sm:$0xff]
          %v682 = vld [vmem:[#allocation3 + $0xf8] sm:$0xff]
          %v683 = vld [vmem:[#allocation3 + $0x100] sm:$0xff]
          %v684 = vld [vmem:[#allocation3 + $0x108] sm:$0xff]
          %v685 = vld [vmem:[#allocation3 + $0x110] sm:$0xff]
          %v686 = vld [vmem:[#allocation3 + $0x118] sm:$0xff]
          %v687 = vld [vmem:[#allocation3 + $0x120] sm:$0xff]
          %v688 = vld [vmem:[#allocation3 + $0x128] sm:$0xf]
          %v689 = vld [vmem:[#allocation3 + $0x12c] sm:$0xff]
          %v690 = vld [vmem:[#allocation3 + $0x134] sm:$0xff]
          %v691 = vld [vmem:[#allocation3 + $0x13c] sm:$0xff]
          %v692 = vld [vmem:[#allocation3 + $0x144] sm:$0xff]
          %v693 = vld [vmem:[#allocation3 + $0x14c] sm:$0xff]
          %v694 = vld [vmem:[#allocation3 + $0x154] sm:$0xff]
          %v695 = vld [vmem:[#allocation3 + $0x15c] sm:$0xff]
          %v696 = vld [vmem:[#allocation3 + $0x164] sm:$0xf]
          %v697 = vld [vmem:[#allocation3 + $0x168] sm:$0xff]
          %v698 = vld [vmem:[#allocation3 + $0x170] sm:$0xff]
          %v699 = vld [vmem:[#allocation3 + $0x178] sm:$0xff]
          %v700 = vld [vmem:[#allocation3 + $0x180] sm:$0xff]
          %v701 = vld [vmem:[#allocation3 + $0x188] sm:$0xff]
          %v702 = vld [vmem:[#allocation3 + $0x190] sm:$0xff]
          %v703 = vld [vmem:[#allocation3 + $0x198] sm:$0xff]
          %v704 = vld [vmem:[#allocation3 + $0x1a0] sm:$0xf]
          %v705 = vld [vmem:[#allocation3 + $0x1a4] sm:$0xff]
          %v706 = vld [vmem:[#allocation3 + $0x1ac] sm:$0xff]
          %v707 = vld [vmem:[#allocation3 + $0x1b4] sm:$0xff]
          %v708 = vld [vmem:[#allocation3 + $0x1bc] sm:$0xff]
          %v709 = vld [vmem:[#allocation3 + $0x1c4] sm:$0xff]
          %v710 = vld [vmem:[#allocation3 + $0x1cc] sm:$0xff]
          %v711 = vld [vmem:[#allocation3 + $0x1d4] sm:$0xff]
          %v712 = vld [vmem:[#allocation3 + $0x1dc] sm:$0xf]
          %v713 = vld [vmem:[#allocation3 + $0x1e0] sm:$0xff]
          %v714 = vld [vmem:[#allocation3 + $0x1e8] sm:$0xff]
          %v715 = vld [vmem:[#allocation3 + $0x1f0] sm:$0xff]
          %v716 = vld [vmem:[#allocation3 + $0x1f8] sm:$0xff]
          %v717 = vld [vmem:[#allocation3 + $0x200] sm:$0xff]
          %v718 = vld [vmem:[#allocation3 + $0x208] sm:$0xff]
          %v719 = vld [vmem:[#allocation3 + $0x210] sm:$0xff]
          %v720 = vld [vmem:[#allocation3 + $0x218] sm:$0xf]
          %v721 = vld [vmem:[#allocation3 + $0x21c] sm:$0xff]
          %v722 = vld [vmem:[#allocation3 + $0x224] sm:$0xff]
          %v723 = vld [vmem:[#allocation3 + $0x22c] sm:$0xff]
          %v724 = vld [vmem:[#allocation3 + $0x234] sm:$0xff]
          %v725 = vld [vmem:[#allocation3 + $0x23c] sm:$0xff]
          %v726 = vld [vmem:[#allocation3 + $0x244] sm:$0xff]
          %v727 = vld [vmem:[#allocation3 + $0x24c] sm:$0xff]
          %v728 = vld [vmem:[#allocation3 + $0x254] sm:$0xf]
          %v729 = vld [vmem:[#allocation3 + $0x258] sm:$0xff]
          %v730 = vld [vmem:[#allocation3 + $0x260] sm:$0xff]
          %v731 = vld [vmem:[#allocation3 + $0x268] sm:$0xff]
          %v732 = vld [vmem:[#allocation3 + $0x270] sm:$0xff]
          %v733 = vld [vmem:[#allocation3 + $0x278] sm:$0xff]
          %v734 = vld [vmem:[#allocation3 + $0x280] sm:$0xff]
          %v735 = vld [vmem:[#allocation3 + $0x288] sm:$0xff]
          %v736 = vld [vmem:[#allocation3 + $0x290] sm:$0xf]
          %v737 = vld [vmem:[#allocation3 + $0x294] sm:$0xff]
          %v738 = vld [vmem:[#allocation3 + $0x29c] sm:$0xff]
          %v739 = vld [vmem:[#allocation3 + $0x2a4] sm:$0xff]
          %v740 = vld [vmem:[#allocation3 + $0x2ac] sm:$0xff]
          %v741 = vld [vmem:[#allocation3 + $0x2b4] sm:$0xff]
          %v742 = vld [vmem:[#allocation3 + $0x2bc] sm:$0xff]
          %v743 = vld [vmem:[#allocation3 + $0x2c4] sm:$0xff]
          %v744 = vld [vmem:[#allocation3 + $0x2cc] sm:$0xf]
          %v745 = vld [vmem:[#allocation3 + $0x2d0] sm:$0xff]
          %v746 = vld [vmem:[#allocation3 + $0x2d8] sm:$0xff]
          %v747 = vld [vmem:[#allocation3 + $0x2e0] sm:$0xff]
          %v748 = vld [vmem:[#allocation3 + $0x2e8] sm:$0xff]
          %v749 = vld [vmem:[#allocation3 + $0x2f0] sm:$0xff]
          %v750 = vld [vmem:[#allocation3 + $0x2f8] sm:$0xff]
          %v751 = vld [vmem:[#allocation3 + $0x300] sm:$0xff]
          %v752 = vld [vmem:[#allocation3 + $0x308] sm:$0xf]
          %v753 = vld [vmem:[#allocation3 + $0x30c] sm:$0xff]
          %v754 = vld [vmem:[#allocation3 + $0x314] sm:$0xff]
          %v755 = vld [vmem:[#allocation3 + $0x31c] sm:$0xff]
          %v756 = vld [vmem:[#allocation3 + $0x324] sm:$0xff]
          %v757 = vld [vmem:[#allocation3 + $0x32c] sm:$0xff]
          %v758 = vld [vmem:[#allocation3 + $0x334] sm:$0xff]
          %v759 = vld [vmem:[#allocation3 + $0x33c] sm:$0xff]
          %v760 = vld [vmem:[#allocation3 + $0x344] sm:$0xf]
          %v761 = vld [vmem:[#allocation3 + $0x348] sm:$0xff]
          %v762 = vld [vmem:[#allocation3 + $0x350] sm:$0xff]
          %v763 = vld [vmem:[#allocation3 + $0x358] sm:$0xff]
          %v764 = vld [vmem:[#allocation3 + $0x360] sm:$0xff]
          %v765 = vld [vmem:[#allocation3 + $0x368] sm:$0xff]
          %v766 = vld [vmem:[#allocation3 + $0x370] sm:$0xff]
          %v767 = vld [vmem:[#allocation3 + $0x378] sm:$0xff]
          %v768 = vld [vmem:[#allocation3 + $0x380] sm:$0xf]
          %v769 = vld [vmem:[#allocation3 + $0x384] sm:$0xff]
          %v770 = vld [vmem:[#allocation3 + $0x38c] sm:$0xff]
          %v771 = vld [vmem:[#allocation3 + $0x394] sm:$0xff]
          %v772 = vld [vmem:[#allocation3 + $0x39c] sm:$0xff]
          %v773 = vld [vmem:[#allocation3 + $0x3a4] sm:$0xff]
          %v774 = vld [vmem:[#allocation3 + $0x3ac] sm:$0xff]
          %v775 = vld [vmem:[#allocation3 + $0x3b4] sm:$0xff]
          %v776 = vld [vmem:[#allocation3 + $0x3bc] sm:$0xf]
          %v777 = vld [vmem:[%s4] sm:$0xff]
          %v778 = vld [vmem:[%s4 + $0x8] sm:$0xff]
          %v907 = vunpack.c.l.b16 %v649
          %v908 = vunpack.c.h.b16 %v649
          %v909 = vunpack.c.l.b16 %v650
          %v910 = vunpack.c.h.b16 %v650
          %v911 = vunpack.c.l.b16 %v651
          %v912 = vunpack.c.h.b16 %v651
          %v913 = vunpack.c.l.b16 %v652
          %v914 = vunpack.c.h.b16 %v652
          %v915 = vunpack.c.l.b16 %v653
          %v916 = vunpack.c.h.b16 %v653
          %v917 = vunpack.c.l.b16 %v654
          %v918 = vunpack.c.h.b16 %v654
          %v919 = vunpack.c.l.b16 %v655
          %v920 = vunpack.c.h.b16 %v655
          %v921 = vunpack.c.l.b16 %v656
          %v922 = vunpack.c.l.b16 %v657
          %v923 = vunpack.c.h.b16 %v657
          %v924 = vunpack.c.l.b16 %v658
          %v925 = vunpack.c.h.b16 %v658
          %v926 = vunpack.c.l.b16 %v659
          %v927 = vunpack.c.h.b16 %v659
          %v928 = vunpack.c.l.b16 %v660
          %v929 = vunpack.c.h.b16 %v660
          %v930 = vunpack.c.l.b16 %v661
          %v931 = vunpack.c.h.b16 %v661
          %v932 = vunpack.c.l.b16 %v662
          %v933 = vunpack.c.h.b16 %v662
          %v934 = vunpack.c.l.b16 %v663
          %v935 = vunpack.c.h.b16 %v663
          %v936 = vunpack.c.l.b16 %v664
          %v937 = vunpack.c.l.b16 %v665
          %v938 = vunpack.c.h.b16 %v665
          %v939 = vunpack.c.l.b16 %v666
          %v940 = vunpack.c.h.b16 %v666
          %v941 = vunpack.c.l.b16 %v667
          %v942 = vunpack.c.h.b16 %v667
          %v943 = vunpack.c.l.b16 %v668
          %v944 = vunpack.c.h.b16 %v668
          %v945 = vunpack.c.l.b16 %v669
          %v946 = vunpack.c.h.b16 %v669
          %v947 = vunpack.c.l.b16 %v670
          %v948 = vunpack.c.h.b16 %v670
          %v949 = vunpack.c.l.b16 %v671
          %v950 = vunpack.c.h.b16 %v671
          %v951 = vunpack.c.l.b16 %v672
          %v952 = vunpack.c.l.b16 %v673
          %v953 = vunpack.c.h.b16 %v673
          %v954 = vunpack.c.l.b16 %v674
          %v955 = vunpack.c.h.b16 %v674
          %v956 = vunpack.c.l.b16 %v675
          %v957 = vunpack.c.h.b16 %v675
          %v958 = vunpack.c.l.b16 %v676
          %v959 = vunpack.c.h.b16 %v676
          %v960 = vunpack.c.l.b16 %v677
          %v961 = vunpack.c.h.b16 %v677
          %v962 = vunpack.c.l.b16 %v678
          %v963 = vunpack.c.h.b16 %v678
          %v964 = vunpack.c.l.b16 %v679
          %v965 = vunpack.c.h.b16 %v679
          %v966 = vunpack.c.l.b16 %v680
          %v967 = vunpack.c.l.b16 %v681
          %v968 = vunpack.c.h.b16 %v681
          %v969 = vunpack.c.l.b16 %v682
          %v970 = vunpack.c.h.b16 %v682
          %v971 = vunpack.c.l.b16 %v683
          %v972 = vunpack.c.h.b16 %v683
          %v973 = vunpack.c.l.b16 %v684
          %v974 = vunpack.c.h.b16 %v684
          %v975 = vunpack.c.l.b16 %v685
          %v976 = vunpack.c.h.b16 %v685
          %v977 = vunpack.c.l.b16 %v686
          %v978 = vunpack.c.h.b16 %v686
          %v979 = vunpack.c.l.b16 %v687
          %v980 = vunpack.c.h.b16 %v687
          %v981 = vunpack.c.l.b16 %v688
          %v982 = vunpack.c.l.b16 %v689
          %v983 = vunpack.c.h.b16 %v689
          %v984 = vunpack.c.l.b16 %v690
          %v985 = vunpack.c.h.b16 %v690
          %v986 = vunpack.c.l.b16 %v691
          %v987 = vunpack.c.h.b16 %v691
          %v988 = vunpack.c.l.b16 %v692
          %v989 = vunpack.c.h.b16 %v692
          %v990 = vunpack.c.l.b16 %v693
          %v991 = vunpack.c.h.b16 %v693
          %v992 = vunpack.c.l.b16 %v694
          %v993 = vunpack.c.h.b16 %v694
          %v994 = vunpack.c.l.b16 %v695
          %v995 = vunpack.c.h.b16 %v695
          %v996 = vunpack.c.l.b16 %v696
          %v997 = vunpack.c.l.b16 %v697
          %v998 = vunpack.c.h.b16 %v697
          %v999 = vunpack.c.l.b16 %v698
          %v1000 = vunpack.c.h.b16 %v698
          %v1001 = vunpack.c.l.b16 %v699
          %v1002 = vunpack.c.h.b16 %v699
          %v1003 = vunpack.c.l.b16 %v700
          %v1004 = vunpack.c.h.b16 %v700
          %v1005 = vunpack.c.l.b16 %v701
          %v1006 = vunpack.c.h.b16 %v701
          %v1007 = vunpack.c.l.b16 %v702
          %v1008 = vunpack.c.h.b16 %v702
          %v1009 = vunpack.c.l.b16 %v703
          %v1010 = vunpack.c.h.b16 %v703
          %v1011 = vunpack.c.l.b16 %v704
          %v1012 = vunpack.c.l.b16 %v705
          %v1013 = vunpack.c.h.b16 %v705
          %v1014 = vunpack.c.l.b16 %v706
          %v1015 = vunpack.c.h.b16 %v706
          %v1016 = vunpack.c.l.b16 %v707
          %v1017 = vunpack.c.h.b16 %v707
          %v1018 = vunpack.c.l.b16 %v708
          %v1019 = vunpack.c.h.b16 %v708
          %v1020 = vunpack.c.l.b16 %v709
          %v1021 = vunpack.c.h.b16 %v709
          %v1022 = vunpack.c.l.b16 %v710
          %v1023 = vunpack.c.h.b16 %v710
          %v1024 = vunpack.c.l.b16 %v711
          %v1025 = vunpack.c.h.b16 %v711
          %v1026 = vunpack.c.l.b16 %v712
          %v1027 = vunpack.c.l.b16 %v713
          %v1028 = vunpack.c.h.b16 %v713
          %v1029 = vunpack.c.l.b16 %v714
          %v1030 = vunpack.c.h.b16 %v714
          %v1031 = vunpack.c.l.b16 %v715
          %v1032 = vunpack.c.h.b16 %v715
          %v1033 = vunpack.c.l.b16 %v716
          %v1034 = vunpack.c.h.b16 %v716
          %v1035 = vunpack.c.l.b16 %v717
          %v1036 = vunpack.c.h.b16 %v717
          %v1037 = vunpack.c.l.b16 %v718
          %v1038 = vunpack.c.h.b16 %v718
          %v1039 = vunpack.c.l.b16 %v719
          %v1040 = vunpack.c.h.b16 %v719
          %v1041 = vunpack.c.l.b16 %v720
          %v1042 = vunpack.c.l.b16 %v721
          %v1043 = vunpack.c.h.b16 %v721
          %v1044 = vunpack.c.l.b16 %v722
          %v1045 = vunpack.c.h.b16 %v722
          %v1046 = vunpack.c.l.b16 %v723
          %v1047 = vunpack.c.h.b16 %v723
          %v1048 = vunpack.c.l.b16 %v724
          %v1049 = vunpack.c.h.b16 %v724
          %v1050 = vunpack.c.l.b16 %v725
          %v1051 = vunpack.c.h.b16 %v725
          %v1052 = vunpack.c.l.b16 %v726
          %v1053 = vunpack.c.h.b16 %v726
          %v1054 = vunpack.c.l.b16 %v727
          %v1055 = vunpack.c.h.b16 %v727
          %v1056 = vunpack.c.l.b16 %v728
          %v1057 = vunpack.c.l.b16 %v729
          %v1058 = vunpack.c.h.b16 %v729
          %v1059 = vunpack.c.l.b16 %v730
          %v1060 = vunpack.c.h.b16 %v730
          %v1061 = vunpack.c.l.b16 %v731
          %v1062 = vunpack.c.h.b16 %v731
          %v1063 = vunpack.c.l.b16 %v732
          %v1064 = vunpack.c.h.b16 %v732
          %v1065 = vunpack.c.l.b16 %v733
          %v1066 = vunpack.c.h.b16 %v733
          %v1067 = vunpack.c.l.b16 %v734
          %v1068 = vunpack.c.h.b16 %v734
          %v1069 = vunpack.c.l.b16 %v735
          %v1070 = vunpack.c.h.b16 %v735
          %v1071 = vunpack.c.l.b16 %v736
          %v1072 = vunpack.c.l.b16 %v737
          %v1073 = vunpack.c.h.b16 %v737
          %v1074 = vunpack.c.l.b16 %v738
          %v1075 = vunpack.c.h.b16 %v738
          %v1076 = vunpack.c.l.b16 %v739
          %v1077 = vunpack.c.h.b16 %v739
          %v1078 = vunpack.c.l.b16 %v740
          %v1079 = vunpack.c.h.b16 %v740
          %v1080 = vunpack.c.l.b16 %v741
          %v1081 = vunpack.c.h.b16 %v741
          %v1082 = vunpack.c.l.b16 %v742
          %v1083 = vunpack.c.h.b16 %v742
          %v1084 = vunpack.c.l.b16 %v743
          %v1085 = vunpack.c.h.b16 %v743
          %v1086 = vunpack.c.l.b16 %v744
          %v1087 = vunpack.c.l.b16 %v745
          %v1088 = vunpack.c.h.b16 %v745
          %v1089 = vunpack.c.l.b16 %v746
          %v1090 = vunpack.c.h.b16 %v746
          %v1091 = vunpack.c.l.b16 %v747
          %v1092 = vunpack.c.h.b16 %v747
          %v1093 = vunpack.c.l.b16 %v748
          %v1094 = vunpack.c.h.b16 %v748
          %v1095 = vunpack.c.l.b16 %v749
          %v1096 = vunpack.c.h.b16 %v749
          %v1097 = vunpack.c.l.b16 %v750
          %v1098 = vunpack.c.h.b16 %v750
          %v1099 = vunpack.c.l.b16 %v751
          %v1100 = vunpack.c.h.b16 %v751
          %v1101 = vunpack.c.l.b16 %v752
          %v1102 = vunpack.c.l.b16 %v753
          %v1103 = vunpack.c.h.b16 %v753
          %v1104 = vunpack.c.l.b16 %v754
          %v1105 = vunpack.c.h.b16 %v754
          %v1106 = vunpack.c.l.b16 %v755
          %v1107 = vunpack.c.h.b16 %v755
          %v1108 = vunpack.c.l.b16 %v756
          %v1109 = vunpack.c.h.b16 %v756
          %v1110 = vunpack.c.l.b16 %v757
          %v1111 = vunpack.c.h.b16 %v757
          %v1112 = vunpack.c.l.b16 %v758
          %v1113 = vunpack.c.h.b16 %v758
          %v1114 = vunpack.c.l.b16 %v759
          %v1115 = vunpack.c.h.b16 %v759
          %v1116 = vunpack.c.l.b16 %v760
          %v1117 = vunpack.c.l.b16 %v761
          %v1118 = vunpack.c.h.b16 %v761
          %v1119 = vunpack.c.l.b16 %v762
          %v1120 = vunpack.c.h.b16 %v762
          %v1121 = vunpack.c.l.b16 %v763
          %v1122 = vunpack.c.h.b16 %v763
          %v1123 = vunpack.c.l.b16 %v764
          %v1124 = vunpack.c.h.b16 %v764
          %v1125 = vunpack.c.l.b16 %v765
          %v1126 = vunpack.c.h.b16 %v765
          %v1127 = vunpack.c.l.b16 %v766
          %v1128 = vunpack.c.h.b16 %v766
          %v1129 = vunpack.c.l.b16 %v767
          %v1130 = vunpack.c.h.b16 %v767
          %v1131 = vunpack.c.l.b16 %v768
          %v1132 = vunpack.c.l.b16 %v769
          %v1133 = vunpack.c.h.b16 %v769
          %v1134 = vunpack.c.l.b16 %v770
          %v1135 = vunpack.c.h.b16 %v770
          %v1136 = vunpack.c.l.b16 %v771
          %v1137 = vunpack.c.h.b16 %v771
          %v1138 = vunpack.c.l.b16 %v772
          %v1139 = vunpack.c.h.b16 %v772
          %v1140 = vunpack.c.l.b16 %v773
          %v1141 = vunpack.c.h.b16 %v773
          %v1142 = vunpack.c.l.b16 %v774
          %v1143 = vunpack.c.h.b16 %v774
          %v1144 = vunpack.c.l.b16 %v775
          %v1145 = vunpack.c.h.b16 %v775
          %v1146 = vunpack.c.l.b16 %v776
          %v1147 = vpack.c.b16 %v922, %v907
          %v1148 = vpack.c.b16 %v923, %v908
          %v1149 = vpack.c.b16 %v924, %v909
          %v1150 = vpack.c.b16 %v925, %v910
          %v1151 = vpack.c.b16 %v926, %v911
          %v1152 = vpack.c.b16 %v927, %v912
          %v1153 = vpack.c.b16 %v928, %v913
          %v1154 = vpack.c.b16 %v929, %v914
          %v1155 = vpack.c.b16 %v930, %v915
          %v1156 = vpack.c.b16 %v931, %v916
          %v1157 = vpack.c.b16 %v932, %v917
          %v1158 = vpack.c.b16 %v933, %v918
          %v1159 = vpack.c.b16 %v934, %v919
          %v1160 = vpack.c.b16 %v935, %v920
          %v1161 = vpack.c.b16 %v936, %v921
          %v1162 = vpack.c.b16 %v952, %v937
          %v1163 = vpack.c.b16 %v953, %v938
          %v1164 = vpack.c.b16 %v954, %v939
          %v1165 = vpack.c.b16 %v955, %v940
          %v1166 = vpack.c.b16 %v956, %v941
          %v1167 = vpack.c.b16 %v957, %v942
          %v1168 = vpack.c.b16 %v958, %v943
          %v1169 = vpack.c.b16 %v959, %v944
          %v1170 = vpack.c.b16 %v960, %v945
          %v1171 = vpack.c.b16 %v961, %v946
          %v1172 = vpack.c.b16 %v962, %v947
          %v1173 = vpack.c.b16 %v963, %v948
          %v1174 = vpack.c.b16 %v964, %v949
          %v1175 = vpack.c.b16 %v965, %v950
          %v1176 = vpack.c.b16 %v966, %v951
          %v1177 = vpack.c.b16 %v982, %v967
          %v1178 = vpack.c.b16 %v983, %v968
          %v1179 = vpack.c.b16 %v984, %v969
          %v1180 = vpack.c.b16 %v985, %v970
          %v1181 = vpack.c.b16 %v986, %v971
          %v1182 = vpack.c.b16 %v987, %v972
          %v1183 = vpack.c.b16 %v988, %v973
          %v1184 = vpack.c.b16 %v989, %v974
          %v1185 = vpack.c.b16 %v990, %v975
          %v1186 = vpack.c.b16 %v991, %v976
          %v1187 = vpack.c.b16 %v992, %v977
          %v1188 = vpack.c.b16 %v993, %v978
          %v1189 = vpack.c.b16 %v994, %v979
          %v1190 = vpack.c.b16 %v995, %v980
          %v1191 = vpack.c.b16 %v996, %v981
          %v1192 = vpack.c.b16 %v1012, %v997
          %v1193 = vpack.c.b16 %v1013, %v998
          %v1194 = vpack.c.b16 %v1014, %v999
          %v1195 = vpack.c.b16 %v1015, %v1000
          %v1196 = vpack.c.b16 %v1016, %v1001
          %v1197 = vpack.c.b16 %v1017, %v1002
          %v1198 = vpack.c.b16 %v1018, %v1003
          %v1199 = vpack.c.b16 %v1019, %v1004
          %v1200 = vpack.c.b16 %v1020, %v1005
          %v1201 = vpack.c.b16 %v1021, %v1006
          %v1202 = vpack.c.b16 %v1022, %v1007
          %v1203 = vpack.c.b16 %v1023, %v1008
          %v1204 = vpack.c.b16 %v1024, %v1009
          %v1205 = vpack.c.b16 %v1025, %v1010
          %v1206 = vpack.c.b16 %v1026, %v1011
          %v1207 = vpack.c.b16 %v1042, %v1027
          %v1208 = vpack.c.b16 %v1043, %v1028
          %v1209 = vpack.c.b16 %v1044, %v1029
          %v1210 = vpack.c.b16 %v1045, %v1030
          %v1211 = vpack.c.b16 %v1046, %v1031
          %v1212 = vpack.c.b16 %v1047, %v1032
          %v1213 = vpack.c.b16 %v1048, %v1033
          %v1214 = vpack.c.b16 %v1049, %v1034
          %v1215 = vpack.c.b16 %v1050, %v1035
          %v1216 = vpack.c.b16 %v1051, %v1036
          %v1217 = vpack.c.b16 %v1052, %v1037
          %v1218 = vpack.c.b16 %v1053, %v1038
          %v1219 = vpack.c.b16 %v1054, %v1039
          %v1220 = vpack.c.b16 %v1055, %v1040
          %v1221 = vpack.c.b16 %v1056, %v1041
          %v1222 = vpack.c.b16 %v1072, %v1057
          %v1223 = vpack.c.b16 %v1073, %v1058
          %v1224 = vpack.c.b16 %v1074, %v1059
          %v1225 = vpack.c.b16 %v1075, %v1060
          %v1226 = vpack.c.b16 %v1076, %v1061
          %v1227 = vpack.c.b16 %v1077, %v1062
          %v1228 = vpack.c.b16 %v1078, %v1063
          %v1229 = vpack.c.b16 %v1079, %v1064
          %v1230 = vpack.c.b16 %v1080, %v1065
          %v1231 = vpack.c.b16 %v1081, %v1066
          %v1232 = vpack.c.b16 %v1082, %v1067
          %v1233 = vpack.c.b16 %v1083, %v1068
          %v1234 = vpack.c.b16 %v1084, %v1069
          %v1235 = vpack.c.b16 %v1085, %v1070
          %v1236 = vpack.c.b16 %v1086, %v1071
          %v1237 = vpack.c.b16 %v1102, %v1087
          %v1238 = vpack.c.b16 %v1103, %v1088
          %v1239 = vpack.c.b16 %v1104, %v1089
          %v1240 = vpack.c.b16 %v1105, %v1090
          %v1241 = vpack.c.b16 %v1106, %v1091
          %v1242 = vpack.c.b16 %v1107, %v1092
          %v1243 = vpack.c.b16 %v1108, %v1093
          %v1244 = vpack.c.b16 %v1109, %v1094
          %v1245 = vpack.c.b16 %v1110, %v1095
          %v1246 = vpack.c.b16 %v1111, %v1096
          %v1247 = vpack.c.b16 %v1112, %v1097
          %v1248 = vpack.c.b16 %v1113, %v1098
          %v1249 = vpack.c.b16 %v1114, %v1099
          %v1250 = vpack.c.b16 %v1115, %v1100
          %v1251 = vpack.c.b16 %v1116, %v1101
          %v1252 = vpack.c.b16 %v1132, %v1117
          %v1253 = vpack.c.b16 %v1133, %v1118
          %v1254 = vpack.c.b16 %v1134, %v1119
          %v1255 = vpack.c.b16 %v1135, %v1120
          %v1256 = vpack.c.b16 %v1136, %v1121
          %v1257 = vpack.c.b16 %v1137, %v1122
          %v1258 = vpack.c.b16 %v1138, %v1123
          %v1259 = vpack.c.b16 %v1139, %v1124
          %v1260 = vpack.c.b16 %v1140, %v1125
          %v1261 = vpack.c.b16 %v1141, %v1126
          %v1262 = vpack.c.b16 %v1142, %v1127
          %v1263 = vpack.c.b16 %v1143, %v1128
          %v1264 = vpack.c.b16 %v1144, %v1129
          %v1265 = vpack.c.b16 %v1145, %v1130
          %v1266 = vpack.c.b16 %v1146, %v1131
          %v1389 = vlaneseq
          %v1390 = vshrl.u32 %v1389, 7
          %v1391 = vsub.s32 0, %v1390
          %v1392 = vrot.slane %v777, %v1391
          %v1393 = vlaneseq
          %v1394 = vshrl.u32 %v1393, 7
          %v1395 = vsub.s32 1, %v1394
          %v1396 = vrot.slane %v777, %v1395
          %v1397 = vlaneseq
          %v1398 = vshrl.u32 %v1397, 7
          %v1399 = vsub.s32 2, %v1398
          %v1400 = vrot.slane %v777, %v1399
          %v1401 = vlaneseq
          %v1402 = vshrl.u32 %v1401, 7
          %v1403 = vsub.s32 3, %v1402
          %v1404 = vrot.slane %v777, %v1403
          %v1405 = vlaneseq
          %v1406 = vshrl.u32 %v1405, 7
          %v1407 = vsub.s32 4, %v1406
          %v1408 = vrot.slane %v777, %v1407
          %v1409 = vlaneseq
          %v1410 = vshrl.u32 %v1409, 7
          %v1411 = vsub.s32 5, %v1410
          %v1412 = vrot.slane %v777, %v1411
          %v1413 = vlaneseq
          %v1414 = vshrl.u32 %v1413, 7
          %v1415 = vsub.s32 6, %v1414
          %v1416 = vrot.slane %v777, %v1415
          %v1417 = vlaneseq
          %v1418 = vshrl.u32 %v1417, 7
          %v1419 = vsub.s32 7, %v1418
          %v1420 = vrot.slane %v777, %v1419
          %v1421 = vlaneseq
          %v1422 = vshrl.u32 %v1421, 7
          %v1423 = vsub.s32 0, %v1422
          %v1424 = vrot.slane %v778, %v1423
          %v1425 = vlaneseq
          %v1426 = vshrl.u32 %v1425, 7
          %v1427 = vsub.s32 1, %v1426
          %v1428 = vrot.slane %v778, %v1427
          %v1429 = vlaneseq
          %v1430 = vshrl.u32 %v1429, 7
          %v1431 = vsub.s32 2, %v1430
          %v1432 = vrot.slane %v778, %v1431
          %v1433 = vlaneseq
          %v1434 = vshrl.u32 %v1433, 7
          %v1435 = vsub.s32 3, %v1434
          %v1436 = vrot.slane %v778, %v1435
          %v1437 = vlaneseq
          %v1438 = vshrl.u32 %v1437, 7
          %v1439 = vsub.s32 4, %v1438
          %v1440 = vrot.slane %v778, %v1439
          %v1441 = vlaneseq
          %v1442 = vshrl.u32 %v1441, 7
          %v1443 = vsub.s32 5, %v1442
          %v1444 = vrot.slane %v778, %v1443
          %v1445 = vlaneseq
          %v1446 = vshrl.u32 %v1445, 7
          %v1447 = vsub.s32 6, %v1446
          %v1448 = vrot.slane %v778, %v1447
          %1464 = vmatprep.subr.bf16.mxu0 %v1148
          %1465 = vmatpush1.bf16.msra.mxu0 %v1147
          %1466 = vmatprep.subr.bf16.mxu0 %v1163
          %1467 = vmatpush1.bf16.msra.mxu0 %v1162
          %1468 = vmatprep.subr.bf16.mxu0 %v1178
          %1469 = vmatpush1.bf16.msra.mxu0 %v1177
          %1470 = vmatprep.subr.bf16.mxu0 %v1193
          %1471 = vmatpush1.bf16.msra.mxu0 %v1192
          %1472 = vmatprep.subr.bf16.mxu0 %v1208
          %1473 = vmatpush1.bf16.msra.mxu0 %v1207
          %1474 = vmatprep.subr.bf16.mxu0 %v1223
          %1475 = vmatpush1.bf16.msra.mxu0 %v1222
          %1476 = vmatprep.subr.bf16.mxu0 %v1238
          %1477 = vmatpush1.bf16.msra.mxu0 %v1237
          %1478 = vmatprep.subr.bf16.mxu0 %v1253
          %1479 = vmatpush1.bf16.msra.mxu0 %v1252
          %1480 = vmatprep.subr.bf16.mxu0 0
          %1481 = vmatpush1.bf16.msra.mxu0 0
          %1482 = vmatprep.subr.bf16.mxu0 0
          %1483 = vmatpush1.bf16.msra.mxu0 0
          %1484 = vmatprep.subr.bf16.mxu0 0
          %1485 = vmatpush1.bf16.msra.mxu0 0
          %1486 = vmatprep.subr.bf16.mxu0 0
          %1487 = vmatpush1.bf16.msra.mxu0 0
          %1488 = vmatprep.subr.bf16.mxu0 0
          %1489 = vmatpush1.bf16.msra.mxu0 0
          %1490 = vmatprep.subr.bf16.mxu0 0
          %1491 = vmatpush1.bf16.msra.mxu0 0
          %1492 = vmatprep.subr.bf16.mxu0 0
          %1493 = vmatpush1.bf16.msra.mxu0 0
          %1494 = vmatprep.subr.bf16.mxu0 0
          %1495 = vmatpush1.bf16.msra.mxu0 0
          %1496 = vmatprep.mubr.bf16.mxu0 0
          %1497 = vmatmul.mubr.bf16.gmra.mrb[0].mxu0 %v648
          %v1498 = vpop.f32.mrb[0].mxu0
          %v1499 = vadd.f32 %v1392, %v1498
          %v1500 = vpop.f32.mrb[0].mxu0
          %v1501 = vadd.f32 %v1396, %v1500
          %v1502 = vpop.f32.mrb[0].mxu0
          %v1503 = vpop.f32.mrb[0].mxu0
          %1504 = vdwg.mxu0
          %1505 = vmatprep.subr.bf16.mxu0 %v1150
          %1506 = vmatpush1.bf16.msra.mxu0 %v1149
          %1507 = vmatprep.subr.bf16.mxu0 %v1165
          %1508 = vmatpush1.bf16.msra.mxu0 %v1164
          %1509 = vmatprep.subr.bf16.mxu0 %v1180
          %1510 = vmatpush1.bf16.msra.mxu0 %v1179
          %1511 = vmatprep.subr.bf16.mxu0 %v1195
          %1512 = vmatpush1.bf16.msra.mxu0 %v1194
          %1513 = vmatprep.subr.bf16.mxu0 %v1210
          %1514 = vmatpush1.bf16.msra.mxu0 %v1209
          %1515 = vmatprep.subr.bf16.mxu0 %v1225
          %1516 = vmatpush1.bf16.msra.mxu0 %v1224
          %1517 = vmatprep.subr.bf16.mxu0 %v1240
          %1518 = vmatpush1.bf16.msra.mxu0 %v1239
          %1519 = vmatprep.subr.bf16.mxu0 %v1255
          %1520 = vmatpush1.bf16.msra.mxu0 %v1254
          %1521 = vmatprep.subr.bf16.mxu0 0
          %1522 = vmatpush1.bf16.msra.mxu0 0
          %1523 = vmatprep.subr.bf16.mxu0 0
          %1524 = vmatpush1.bf16.msra.mxu0 0
          %1525 = vmatprep.subr.bf16.mxu0 0
          %1526 = vmatpush1.bf16.msra.mxu0 0
          %1527 = vmatprep.subr.bf16.mxu0 0
          %1528 = vmatpush1.bf16.msra.mxu0 0
          %1529 = vmatprep.subr.bf16.mxu0 0
          %1530 = vmatpush1.bf16.msra.mxu0 0
          %1531 = vmatprep.subr.bf16.mxu0 0
          %1532 = vmatpush1.bf16.msra.mxu0 0
          %1533 = vmatprep.subr.bf16.mxu0 0
          %1534 = vmatpush1.bf16.msra.mxu0 0
          %1535 = vmatprep.subr.bf16.mxu0 0
          %1536 = vmatpush1.bf16.msra.mxu0 0
          %1537 = vmatprep.mubr.bf16.mxu0 0
          %1538 = vmatmul.mubr.bf16.gmra.mrb[0].mxu0 %v648
          %v1539 = vpop.f32.mrb[0].mxu0
          %v1540 = vadd.f32 %v1400, %v1539
          %v1541 = vpop.f32.mrb[0].mxu0
          %v1542 = vadd.f32 %v1404, %v1541
          %v1543 = vpop.f32.mrb[0].mxu0
          %v1544 = vpop.f32.mrb[0].mxu0
          %1545 = vdwg.mxu0
          %1546 = vmatprep.subr.bf16.mxu0 %v1152
          %1547 = vmatpush1.bf16.msra.mxu0 %v1151
          %1548 = vmatprep.subr.bf16.mxu0 %v1167
          %1549 = vmatpush1.bf16.msra.mxu0 %v1166
          %1550 = vmatprep.subr.bf16.mxu0 %v1182
          %1551 = vmatpush1.bf16.msra.mxu0 %v1181
          %1552 = vmatprep.subr.bf16.mxu0 %v1197
          %1553 = vmatpush1.bf16.msra.mxu0 %v1196
          %1554 = vmatprep.subr.bf16.mxu0 %v1212
          %1555 = vmatpush1.bf16.msra.mxu0 %v1211
          %1556 = vmatprep.subr.bf16.mxu0 %v1227
          %1557 = vmatpush1.bf16.msra.mxu0 %v1226
          %1558 = vmatprep.subr.bf16.mxu0 %v1242
          %1559 = vmatpush1.bf16.msra.mxu0 %v1241
          %1560 = vmatprep.subr.bf16.mxu0 %v1257
          %1561 = vmatpush1.bf16.msra.mxu0 %v1256
          %1562 = vmatprep.subr.bf16.mxu0 0
          %1563 = vmatpush1.bf16.msra.mxu0 0
          %1564 = vmatprep.subr.bf16.mxu0 0
          %1565 = vmatpush1.bf16.msra.mxu0 0
          %1566 = vmatprep.subr.bf16.mxu0 0
          %1567 = vmatpush1.bf16.msra.mxu0 0
          %1568 = vmatprep.subr.bf16.mxu0 0
          %1569 = vmatpush1.bf16.msra.mxu0 0
          %1570 = vmatprep.subr.bf16.mxu0 0
          %1571 = vmatpush1.bf16.msra.mxu0 0
          %1572 = vmatprep.subr.bf16.mxu0 0
          %1573 = vmatpush1.bf16.msra.mxu0 0
          %1574 = vmatprep.subr.bf16.mxu0 0
          %1575 = vmatpush1.bf16.msra.mxu0 0
          %1576 = vmatprep.subr.bf16.mxu0 0
          %1577 = vmatpush1.bf16.msra.mxu0 0
          %1578 = vmatprep.mubr.bf16.mxu0 0
          %1579 = vmatmul.mubr.bf16.gmra.mrb[0].mxu0 %v648
          %v1580 = vpop.f32.mrb[0].mxu0
          %v1581 = vadd.f32 %v1408, %v1580
          %v1582 = vpop.f32.mrb[0].mxu0
          %v1583 = vadd.f32 %v1412, %v1582
          %v1584 = vpop.f32.mrb[0].mxu0
          %v1585 = vpop.f32.mrb[0].mxu0
          %1586 = vdwg.mxu0
          %1587 = vmatprep.subr.bf16.mxu0 %v1154
          %1588 = vmatpush1.bf16.msra.mxu0 %v1153
          %1589 = vmatprep.subr.bf16.mxu0 %v1169
          %1590 = vmatpush1.bf16.msra.mxu0 %v1168
          %1591 = vmatprep.subr.bf16.mxu0 %v1184
          %1592 = vmatpush1.bf16.msra.mxu0 %v1183
          %1593 = vmatprep.subr.bf16.mxu0 %v1199
          %1594 = vmatpush1.bf16.msra.mxu0 %v1198
          %1595 = vmatprep.subr.bf16.mxu0 %v1214
          %1596 = vmatpush1.bf16.msra.mxu0 %v1213
          %1597 = vmatprep.subr.bf16.mxu0 %v1229
          %1598 = vmatpush1.bf16.msra.mxu0 %v1228
          %1599 = vmatprep.subr.bf16.mxu0 %v1244
          %1600 = vmatpush1.bf16.msra.mxu0 %v1243
          %1601 = vmatprep.subr.bf16.mxu0 %v1259
          %1602 = vmatpush1.bf16.msra.mxu0 %v1258
          %1603 = vmatprep.subr.bf16.mxu0 0
          %1604 = vmatpush1.bf16.msra.mxu0 0
          %1605 = vmatprep.subr.bf16.mxu0 0
          %1606 = vmatpush1.bf16.msra.mxu0 0
          %1607 = vmatprep.subr.bf16.mxu0 0
          %1608 = vmatpush1.bf16.msra.mxu0 0
          %1609 = vmatprep.subr.bf16.mxu0 0
          %1610 = vmatpush1.bf16.msra.mxu0 0
          %1611 = vmatprep.subr.bf16.mxu0 0
          %1612 = vmatpush1.bf16.msra.mxu0 0
          %1613 = vmatprep.subr.bf16.mxu0 0
          %1614 = vmatpush1.bf16.msra.mxu0 0
          %1615 = vmatprep.subr.bf16.mxu0 0
          %1616 = vmatpush1.bf16.msra.mxu0 0
          %1617 = vmatprep.subr.bf16.mxu0 0
          %1618 = vmatpush1.bf16.msra.mxu0 0
          %1619 = vmatprep.mubr.bf16.mxu0 0
          %1620 = vmatmul.mubr.bf16.gmra.mrb[0].mxu0 %v648
          %v1621 = vpop.f32.mrb[0].mxu0
          %v1622 = vadd.f32 %v1416, %v1621
          %v1623 = vpop.f32.mrb[0].mxu0
          %v1624 = vadd.f32 %v1420, %v1623
          %v1625 = vpop.f32.mrb[0].mxu0
          %v1626 = vpop.f32.mrb[0].mxu0
          %1627 = vdwg.mxu0
          %1628 = vmatprep.subr.bf16.mxu0 %v1156
          %1629 = vmatpush1.bf16.msra.mxu0 %v1155
          %1630 = vmatprep.subr.bf16.mxu0 %v1171
          %1631 = vmatpush1.bf16.msra.mxu0 %v1170
          %1632 = vmatprep.subr.bf16.mxu0 %v1186
          %1633 = vmatpush1.bf16.msra.mxu0 %v1185
          %1634 = vmatprep.subr.bf16.mxu0 %v1201
          %1635 = vmatpush1.bf16.msra.mxu0 %v1200
          %1636 = vmatprep.subr.bf16.mxu0 %v1216
          %1637 = vmatpush1.bf16.msra.mxu0 %v1215
          %1638 = vmatprep.subr.bf16.mxu0 %v1231
          %1639 = vmatpush1.bf16.msra.mxu0 %v1230
          %1640 = vmatprep.subr.bf16.mxu0 %v1246
          %1641 = vmatpush1.bf16.msra.mxu0 %v1245
          %1642 = vmatprep.subr.bf16.mxu0 %v1261
          %1643 = vmatpush1.bf16.msra.mxu0 %v1260
          %1644 = vmatprep.subr.bf16.mxu0 0
          %1645 = vmatpush1.bf16.msra.mxu0 0
          %1646 = vmatprep.subr.bf16.mxu0 0
          %1647 = vmatpush1.bf16.msra.mxu0 0
          %1648 = vmatprep.subr.bf16.mxu0 0
          %1649 = vmatpush1.bf16.msra.mxu0 0
          %1650 = vmatprep.subr.bf16.mxu0 0
          %1651 = vmatpush1.bf16.msra.mxu0 0
          %1652 = vmatprep.subr.bf16.mxu0 0
          %1653 = vmatpush1.bf16.msra.mxu0 0
          %1654 = vmatprep.subr.bf16.mxu0 0
          %1655 = vmatpush1.bf16.msra.mxu0 0
          %1656 = vmatprep.subr.bf16.mxu0 0
          %1657 = vmatpush1.bf16.msra.mxu0 0
          %1658 = vmatprep.subr.bf16.mxu0 0
          %1659 = vmatpush1.bf16.msra.mxu0 0
          %1660 = vmatprep.mubr.bf16.mxu0 0
          %1661 = vmatmul.mubr.bf16.gmra.mrb[0].mxu0 %v648
          %v1662 = vpop.f32.mrb[0].mxu0
          %v1663 = vadd.f32 %v1424, %v1662
          %v1664 = vpop.f32.mrb[0].mxu0
          %v1665 = vadd.f32 %v1428, %v1664
          %v1666 = vpop.f32.mrb[0].mxu0
          %v1667 = vpop.f32.mrb[0].mxu0
          %1668 = vdwg.mxu0
          %1669 = vmatprep.subr.bf16.mxu0 %v1158
          %1670 = vmatpush1.bf16.msra.mxu0 %v1157
          %1671 = vmatprep.subr.bf16.mxu0 %v1173
          %1672 = vmatpush1.bf16.msra.mxu0 %v1172
          %1673 = vmatprep.subr.bf16.mxu0 %v1188
          %1674 = vmatpush1.bf16.msra.mxu0 %v1187
          %1675 = vmatprep.subr.bf16.mxu0 %v1203
          %1676 = vmatpush1.bf16.msra.mxu0 %v1202
          %1677 = vmatprep.subr.bf16.mxu0 %v1218
          %1678 = vmatpush1.bf16.msra.mxu0 %v1217
          %1679 = vmatprep.subr.bf16.mxu0 %v1233
          %1680 = vmatpush1.bf16.msra.mxu0 %v1232
          %1681 = vmatprep.subr.bf16.mxu0 %v1248
          %1682 = vmatpush1.bf16.msra.mxu0 %v1247
          %1683 = vmatprep.subr.bf16.mxu0 %v1263
          %1684 = vmatpush1.bf16.msra.mxu0 %v1262
          %1685 = vmatprep.subr.bf16.mxu0 0
          %1686 = vmatpush1.bf16.msra.mxu0 0
          %1687 = vmatprep.subr.bf16.mxu0 0
          %1688 = vmatpush1.bf16.msra.mxu0 0
          %1689 = vmatprep.subr.bf16.mxu0 0
          %1690 = vmatpush1.bf16.msra.mxu0 0
          %1691 = vmatprep.subr.bf16.mxu0 0
          %1692 = vmatpush1.bf16.msra.mxu0 0
          %1693 = vmatprep.subr.bf16.mxu0 0
          %1694 = vmatpush1.bf16.msra.mxu0 0
          %1695 = vmatprep.subr.bf16.mxu0 0
          %1696 = vmatpush1.bf16.msra.mxu0 0
          %1697 = vmatprep.subr.bf16.mxu0 0
          %1698 = vmatpush1.bf16.msra.mxu0 0
          %1699 = vmatprep.subr.bf16.mxu0 0
          %1700 = vmatpush1.bf16.msra.mxu0 0
          %1701 = vmatprep.mubr.bf16.mxu0 0
          %1702 = vmatmul.mubr.bf16.gmra.mrb[0].mxu0 %v648
          %v1703 = vpop.f32.mrb[0].mxu0
          %v1704 = vadd.f32 %v1432, %v1703
          %v1705 = vpop.f32.mrb[0].mxu0
          %v1706 = vadd.f32 %v1436, %v1705
          %v1707 = vpop.f32.mrb[0].mxu0
          %v1708 = vpop.f32.mrb[0].mxu0
          %1709 = vdwg.mxu0
          %1710 = vmatprep.subr.bf16.mxu0 %v1160
          %1711 = vmatpush1.bf16.msra.mxu0 %v1159
          %1712 = vmatprep.subr.bf16.mxu0 %v1175
          %1713 = vmatpush1.bf16.msra.mxu0 %v1174
          %1714 = vmatprep.subr.bf16.mxu0 %v1190
          %1715 = vmatpush1.bf16.msra.mxu0 %v1189
          %1716 = vmatprep.subr.bf16.mxu0 %v1205
          %1717 = vmatpush1.bf16.msra.mxu0 %v1204
          %1718 = vmatprep.subr.bf16.mxu0 %v1220
          %1719 = vmatpush1.bf16.msra.mxu0 %v1219
          %1720 = vmatprep.subr.bf16.mxu0 %v1235
          %1721 = vmatpush1.bf16.msra.mxu0 %v1234
          %1722 = vmatprep.subr.bf16.mxu0 %v1250
          %1723 = vmatpush1.bf16.msra.mxu0 %v1249
          %1724 = vmatprep.subr.bf16.mxu0 %v1265
          %1725 = vmatpush1.bf16.msra.mxu0 %v1264
          %1726 = vmatprep.subr.bf16.mxu0 0
          %1727 = vmatpush1.bf16.msra.mxu0 0
          %1728 = vmatprep.subr.bf16.mxu0 0
          %1729 = vmatpush1.bf16.msra.mxu0 0
          %1730 = vmatprep.subr.bf16.mxu0 0
          %1731 = vmatpush1.bf16.msra.mxu0 0
          %1732 = vmatprep.subr.bf16.mxu0 0
          %1733 = vmatpush1.bf16.msra.mxu0 0
          %1734 = vmatprep.subr.bf16.mxu0 0
          %1735 = vmatpush1.bf16.msra.mxu0 0
          %1736 = vmatprep.subr.bf16.mxu0 0
          %1737 = vmatpush1.bf16.msra.mxu0 0
          %1738 = vmatprep.subr.bf16.mxu0 0
          %1739 = vmatpush1.bf16.msra.mxu0 0
          %1740 = vmatprep.subr.bf16.mxu0 0
          %1741 = vmatpush1.bf16.msra.mxu0 0
          %1742 = vmatprep.mubr.bf16.mxu0 0
          %1743 = vmatmul.mubr.bf16.gmra.mrb[0].mxu0 %v648
          %v1744 = vpop.f32.mrb[0].mxu0
          %v1745 = vadd.f32 %v1440, %v1744
          %v1746 = vpop.f32.mrb[0].mxu0
          %v1747 = vadd.f32 %v1444, %v1746
          %v1748 = vpop.f32.mrb[0].mxu0
          %v1749 = vpop.f32.mrb[0].mxu0
          %1750 = vdwg.mxu0
          %1751 = vmatprep.subr.bf16.mxu0 0
          %1752 = vmatpush1.bf16.msra.mxu0 %v1161
          %1753 = vmatprep.subr.bf16.mxu0 0
          %1754 = vmatpush1.bf16.msra.mxu0 %v1176
          %1755 = vmatprep.subr.bf16.mxu0 0
          %1756 = vmatpush1.bf16.msra.mxu0 %v1191
          %1757 = vmatprep.subr.bf16.mxu0 0
          %1758 = vmatpush1.bf16.msra.mxu0 %v1206
          %1759 = vmatprep.subr.bf16.mxu0 0
          %1760 = vmatpush1.bf16.msra.mxu0 %v1221
          %1761 = vmatprep.subr.bf16.mxu0 0
          %1762 = vmatpush1.bf16.msra.mxu0 %v1236
          %1763 = vmatprep.subr.bf16.mxu0 0
          %1764 = vmatpush1.bf16.msra.mxu0 %v1251
          %1765 = vmatprep.subr.bf16.mxu0 0
          %1766 = vmatpush1.bf16.msra.mxu0 %v1266
          %1767 = vmatprep.subr.bf16.mxu0 0
          %1768 = vmatpush1.bf16.msra.mxu0 0
          %1769 = vmatprep.subr.bf16.mxu0 0
          %1770 = vmatpush1.bf16.msra.mxu0 0
          %1771 = vmatprep.subr.bf16.mxu0 0
          %1772 = vmatpush1.bf16.msra.mxu0 0
          %1773 = vmatprep.subr.bf16.mxu0 0
          %1774 = vmatpush1.bf16.msra.mxu0 0
          %1775 = vmatprep.subr.bf16.mxu0 0
          %1776 = vmatpush1.bf16.msra.mxu0 0
          %1777 = vmatprep.subr.bf16.mxu0 0
          %1778 = vmatpush1.bf16.msra.mxu0 0
          %1779 = vmatprep.subr.bf16.mxu0 0
          %1780 = vmatpush1.bf16.msra.mxu0 0
          %1781 = vmatprep.subr.bf16.mxu0 0
          %1782 = vmatpush1.bf16.msra.mxu0 0
          %1783 = vmatprep.mubr.bf16.mxu0 0
          %1784 = vmatmul.mubr.bf16.gmra.mrb[0].mxu0 %v648
          %v1785 = vpop.f32.mrb[0].mxu0
          %v1786 = vadd.f32 %v1448, %v1785
          %v1787 = vpop.f32.mrb[0].mxu0
          %v1788 = vpop.f32.mrb[0].mxu0
          %v1789 = vpop.f32.mrb[0].mxu0
          %1790 = vdwg.mxu0
          %v1791 = vadd.s32 %v472, 128
          %v1792 = vadd.s32 %v472, 256
          %v1793 = vadd.s32 %v472, 384
          %v1794 = vadd.s32 %v472, 512
          %v1795 = vadd.s32 %v472, 640
          %v1796 = vadd.s32 %v472, 768
          %v1797 = vadd.s32 %v472, 896
          %v1798 = vadd.s32 %v472, 1024
          %v1799 = vadd.s32 %v472, 1152
          %v1800 = vadd.s32 %v472, 1280
          %v1801 = vadd.s32 %v472, 1408
          %v1802 = vadd.s32 %v472, 1536
          %v1803 = vadd.s32 %v472, 1664
          %v1804 = vadd.s32 %v472, 1792
          %vm1805 = vcmp.lt.s32.totalorder %v472, 512
          %vm1806 = vcmp.lt.s32.totalorder %v1791, 512
          %vm1807 = vcmp.lt.s32.totalorder %v1792, 512
          %vm1808 = vcmp.lt.s32.totalorder %v1793, 512
          %vm1809 = vcmp.lt.s32.totalorder %v1794, 512
          %vm1810 = vcmp.lt.s32.totalorder %v1795, 512
          %vm1811 = vcmp.lt.s32.totalorder %v1796, 512
          %vm1812 = vcmp.lt.s32.totalorder %v1797, 512
          %vm1813 = vcmp.lt.s32.totalorder %v1798, 512
          %vm1814 = vcmp.lt.s32.totalorder %v1799, 512
          %vm1815 = vcmp.lt.s32.totalorder %v1800, 512
          %vm1816 = vcmp.lt.s32.totalorder %v1801, 512
          %vm1817 = vcmp.lt.s32.totalorder %v1802, 512
          %vm1818 = vcmp.lt.s32.totalorder %v1803, 512
          %vm1819 = vcmp.lt.s32.totalorder %v1804, 512
          %v1820 = vmax.f32 %v1499, 0.0
          %v1821 = vmax.f32 %v1501, 0.0
          %v1822 = vmax.f32 %v1540, 0.0
          %v1823 = vmax.f32 %v1542, 0.0
          %v1824 = vmax.f32 %v1581, 0.0
          %v1825 = vmax.f32 %v1583, 0.0
          %v1826 = vmax.f32 %v1622, 0.0
          %v1827 = vmax.f32 %v1624, 0.0
          %v1828 = vmax.f32 %v1663, 0.0
          %v1829 = vmax.f32 %v1665, 0.0
          %v1830 = vmax.f32 %v1704, 0.0
          %v1831 = vmax.f32 %v1706, 0.0
          %v1832 = vmax.f32 %v1745, 0.0
          %v1833 = vmax.f32 %v1747, 0.0
          %v1834 = vmax.f32 %v1786, 0.0
          %v1835 = vxor.u32 %v1499, 2147483648
          %v1836 = vxor.u32 %v1501, 2147483648
          %v1837 = vxor.u32 %v1540, 2147483648
          %v1838 = vxor.u32 %v1542, 2147483648
          %v1839 = vxor.u32 %v1581, 2147483648
          %v1840 = vxor.u32 %v1583, 2147483648
          %v1841 = vxor.u32 %v1622, 2147483648
          %v1842 = vxor.u32 %v1624, 2147483648
          %v1843 = vxor.u32 %v1663, 2147483648
          %v1844 = vxor.u32 %v1665, 2147483648
          %v1845 = vxor.u32 %v1704, 2147483648
          %v1846 = vxor.u32 %v1706, 2147483648
          %v1847 = vxor.u32 %v1745, 2147483648
          %v1848 = vxor.u32 %v1747, 2147483648
          %v1849 = vxor.u32 %v1786, 2147483648
          %v1850 = vmul.f32 %v1835, 1.442695
          %v1851 = vpow.pop %v1850
          %v1852 = vmul.f32 %v1836, 1.442695
          %v1853 = vpow.pop %v1852
          %v1854 = vmul.f32 %v1837, 1.442695
          %v1855 = vpow.pop %v1854
          %v1856 = vmul.f32 %v1838, 1.442695
          %v1857 = vpow.pop %v1856
          %v1858 = vmul.f32 %v1839, 1.442695
          %v1859 = vpow.pop %v1858
          %v1860 = vmul.f32 %v1840, 1.442695
          %v1861 = vpow.pop %v1860
          %v1862 = vmul.f32 %v1841, 1.442695
          %v1863 = vpow.pop %v1862
          %v1864 = vmul.f32 %v1842, 1.442695
          %v1865 = vpow.pop %v1864
          %v1866 = vmul.f32 %v1843, 1.442695
          %v1867 = vpow.pop %v1866
          %v1868 = vmul.f32 %v1844, 1.442695
          %v1869 = vpow.pop %v1868
          %v1870 = vmul.f32 %v1845, 1.442695
          %v1871 = vpow.pop %v1870
          %v1872 = vmul.f32 %v1846, 1.442695
          %v1873 = vpow.pop %v1872
          %v1874 = vmul.f32 %v1847, 1.442695
          %v1875 = vpow.pop %v1874
          %v1876 = vmul.f32 %v1848, 1.442695
          %v1877 = vpow.pop %v1876
          %v1878 = vmul.f32 %v1849, 1.442695
          %v1879 = vpow.pop %v1878
          %v1880 = vadd.f32 %v1851, 1.0
          %v1881 = vadd.f32 %v1853, 1.0
          %v1882 = vadd.f32 %v1855, 1.0
          %v1883 = vadd.f32 %v1857, 1.0
          %v1884 = vadd.f32 %v1859, 1.0
          %v1885 = vadd.f32 %v1861, 1.0
          %v1886 = vadd.f32 %v1863, 1.0
          %v1887 = vadd.f32 %v1865, 1.0
          %v1888 = vadd.f32 %v1867, 1.0
          %v1889 = vadd.f32 %v1869, 1.0
          %v1890 = vadd.f32 %v1871, 1.0
          %v1891 = vadd.f32 %v1873, 1.0
          %v1892 = vadd.f32 %v1875, 1.0
          %v1893 = vadd.f32 %v1877, 1.0
          %v1894 = vadd.f32 %v1879, 1.0
          %v1895 = vrcp.pop %v1880
          %v1896 = vmul.f32 1.0, %v1895
          %v1897 = vrcp.pop %v1881
          %v1898 = vmul.f32 1.0, %v1897
          %v1899 = vrcp.pop %v1882
          %v1900 = vmul.f32 1.0, %v1899
          %v1901 = vrcp.pop %v1883
          %v1902 = vmul.f32 1.0, %v1901
          %v1903 = vrcp.pop %v1884
          %v1904 = vmul.f32 1.0, %v1903
          %v1905 = vrcp.pop %v1885
          %v1906 = vmul.f32 1.0, %v1905
          %v1907 = vrcp.pop %v1886
          %v1908 = vmul.f32 1.0, %v1907
          %v1909 = vrcp.pop %v1887
          %v1910 = vmul.f32 1.0, %v1909
          %v1911 = vrcp.pop %v1888
          %v1912 = vmul.f32 1.0, %v1911
          %v1913 = vrcp.pop %v1889
          %v1914 = vmul.f32 1.0, %v1913
          %v1915 = vrcp.pop %v1890
          %v1916 = vmul.f32 1.0, %v1915
          %v1917 = vrcp.pop %v1891
          %v1918 = vmul.f32 1.0, %v1917
          %v1919 = vrcp.pop %v1892
          %v1920 = vmul.f32 1.0, %v1919
          %v1921 = vrcp.pop %v1893
          %v1922 = vmul.f32 1.0, %v1921
          %v1923 = vrcp.pop %v1894
          %v1924 = vmul.f32 1.0, %v1923
          %v1925 = vmul.f32 %v1499, %v1896
          %v1926 = vmul.f32 %v1501, %v1898
          %v1927 = vmul.f32 %v1540, %v1900
          %v1928 = vmul.f32 %v1542, %v1902
          %v1929 = vmul.f32 %v1581, %v1904
          %v1930 = vmul.f32 %v1583, %v1906
          %v1931 = vmul.f32 %v1622, %v1908
          %v1932 = vmul.f32 %v1624, %v1910
          %v1933 = vmul.f32 %v1663, %v1912
          %v1934 = vmul.f32 %v1665, %v1914
          %v1935 = vmul.f32 %v1704, %v1916
          %v1936 = vmul.f32 %v1706, %v1918
          %v1937 = vmul.f32 %v1745, %v1920
          %v1938 = vmul.f32 %v1747, %v1922
          %v1939 = vmul.f32 %v1786, %v1924
          %v1940 = vsel %vm1805, %v1820, %v1925
          %v1941 = vsel %vm1806, %v1821, %v1926
          %v1942 = vsel %vm1807, %v1822, %v1927
          %v1943 = vsel %vm1808, %v1823, %v1928
          %v1944 = vsel %vm1809, %v1824, %v1929
          %v1945 = vsel %vm1810, %v1825, %v1930
          %v1946 = vsel %vm1811, %v1826, %v1931
          %v1947 = vsel %vm1812, %v1827, %v1932
          %v1948 = vsel %vm1813, %v1828, %v1933
          %v1949 = vsel %vm1814, %v1829, %v1934
          %v1950 = vsel %vm1815, %v1830, %v1935
          %v1951 = vsel %vm1816, %v1831, %v1936
          %v1952 = vsel %vm1817, %v1832, %v1937
          %v1953 = vsel %vm1818, %v1833, %v1938
          %v1954 = vsel %vm1819, %v1834, %v1939
          %v1955 = vpack.c.bf16 %v1940, %v1940
          %v1956 = vpack.c.bf16 %v1941, %v1941
          %v1957 = vpack.c.bf16 %v1942, %v1942
          %v1958 = vpack.c.bf16 %v1943, %v1943
          %v1959 = vpack.c.bf16 %v1944, %v1944
          %v1960 = vpack.c.bf16 %v1945, %v1945
          %v1961 = vpack.c.bf16 %v1946, %v1946
          %v1962 = vpack.c.bf16 %v1947, %v1947
          %v1963 = vpack.c.bf16 %v1948, %v1948
          %v1964 = vpack.c.bf16 %v1949, %v1949
          %v1965 = vpack.c.bf16 %v1950, %v1950
          %v1966 = vpack.c.bf16 %v1951, %v1951
          %v1967 = vpack.c.bf16 %v1952, %v1952
          %v1968 = vpack.c.bf16 %v1953, %v1953
          %v1969 = vpack.c.bf16 %v1954, %v1954
          %v1985 = vcombine.low %v1955, %v1956
          %v1986 = vcombine.low %v1957, %v1958
          %v1987 = vcombine.low %v1959, %v1960
          %v1988 = vcombine.low %v1961, %v1962
          %v1990 = vunpack.c.l.s4 1966171168
          %v1991 = vunpack.c.0.s8 %v1990
          %v1992 = vlaneseq
          %v1993 = vshrl.u32 %v1992, 7
          %v1994 = vsub.s32 %v1991, %v1993
          %v1995 = vrot.slane %v1985, %v1994
          %v1997 = vunpack.c.l.s4 1966171168
          %v1998 = vunpack.c.0.s8 %v1997
          %v1999 = vlaneseq
          %v2000 = vshrl.u32 %v1999, 7
          %v2001 = vsub.s32 %v1998, %v2000
          %v2002 = vrot.slane %v1986, %v2001
          %v2004 = vunpack.c.l.s4 1966171168
          %v2005 = vunpack.c.0.s8 %v2004
          %v2006 = vlaneseq
          %v2007 = vshrl.u32 %v2006, 7
          %v2008 = vsub.s32 %v2005, %v2007
          %v2009 = vrot.slane %v1987, %v2008
          %v2011 = vunpack.c.l.s4 1966171168
          %v2012 = vunpack.c.0.s8 %v2011
          %v2013 = vlaneseq
          %v2014 = vshrl.u32 %v2013, 7
          %v2015 = vsub.s32 %v2012, %v2014
          %v2016 = vrot.slane %v1988, %v2015
          %v2017 = vcombine.low %v1995, %v2002
          %v2018 = vcombine.low %v2009, %v2016
          %v2020 = vunpack.c.l.s4 1966171168
          %v2021 = vunpack.c.0.s8 %v2020
          %v2022 = vlaneseq
          %v2023 = vshrl.u32 %v2022, 7
          %v2024 = vsub.s32 %v2021, %v2023
          %v2025 = vrot.slane %v2017, %v2024
          %v2027 = vunpack.c.l.s4 1966171168
          %v2028 = vunpack.c.0.s8 %v2027
          %v2029 = vlaneseq
          %v2030 = vshrl.u32 %v2029, 7
          %v2031 = vsub.s32 %v2028, %v2030
          %v2032 = vrot.slane %v2018, %v2031
          %v2033 = vcombine.low %v2025, %v2032
          %v2034 = vcombine.low %v1963, %v1964
          %v2035 = vcombine.low %v1965, %v1966
          %v2036 = vcombine.low %v1967, %v1968
          %v2038 = vunpack.c.l.s4 1966171168
          %v2039 = vunpack.c.0.s8 %v2038
          %v2040 = vlaneseq
          %v2041 = vshrl.u32 %v2040, 7
          %v2042 = vsub.s32 %v2039, %v2041
          %v2043 = vrot.slane %v2034, %v2042
          %v2045 = vunpack.c.l.s4 1966171168
          %v2046 = vunpack.c.0.s8 %v2045
          %v2047 = vlaneseq
          %v2048 = vshrl.u32 %v2047, 7
          %v2049 = vsub.s32 %v2046, %v2048
          %v2050 = vrot.slane %v2035, %v2049
          %v2052 = vunpack.c.l.s4 1966171168
          %v2053 = vunpack.c.0.s8 %v2052
          %v2054 = vlaneseq
          %v2055 = vshrl.u32 %v2054, 7
          %v2056 = vsub.s32 %v2053, %v2055
          %v2057 = vrot.slane %v2036, %v2056
          %v2059 = vunpack.c.l.s4 1966171168
          %v2060 = vunpack.c.0.s8 %v2059
          %v2061 = vlaneseq
          %v2062 = vshrl.u32 %v2061, 7
          %v2063 = vsub.s32 %v2060, %v2062
          %v2064 = vrot.slane %v1969, %v2063
          %v2065 = vcombine.low %v2043, %v2050
          %v2066 = vcombine.low %v2057, %v2064
          %v2068 = vunpack.c.l.s4 1966171168
          %v2069 = vunpack.c.0.s8 %v2068
          %v2070 = vlaneseq
          %v2071 = vshrl.u32 %v2070, 7
          %v2072 = vsub.s32 %v2069, %v2071
          %v2073 = vrot.slane %v2065, %v2072
          %v2075 = vunpack.c.l.s4 1966171168
          %v2076 = vunpack.c.0.s8 %v2075
          %v2077 = vlaneseq
          %v2078 = vshrl.u32 %v2077, 7
          %v2079 = vsub.s32 %v2076, %v2078
          %v2080 = vrot.slane %v2066, %v2079
          %v2081 = vcombine.low %v2073, %v2080
          %vm2084 = vcmask 1040384
          %vm2085 = vsmask.f32 256
          %vm2086 = vmand %vm2084, %vm2085
          %vm2087 = vcmask 1041409
          %vm2088 = vsmask.f32 1280
          %vm2089 = vmand %vm2087, %vm2088
          %vm2090 = vmor %vm2089, %vm2086
          %vm2091 = vcmask 1042434
          %vm2092 = vsmask.f32 2304
          %vm2093 = vmand %vm2091, %vm2092
          %vm2094 = vmor %vm2093, %vm2090
          %vm2095 = vcmask 1043459
          %vm2096 = vsmask.f32 3328
          %vm2097 = vmand %vm2095, %vm2096
          %vm2098 = vmor %vm2097, %vm2094
          %vm2099 = vcmask 1044484
          %vm2100 = vsmask.f32 4352
          %vm2101 = vmand %vm2099, %vm2100
          %vm2102 = vmor %vm2101, %vm2098
          %vm2103 = vcmask 1045509
          %vm2104 = vsmask.f32 5376
          %vm2105 = vmand %vm2103, %vm2104
          %vm2106 = vmor %vm2105, %vm2102
          %vm2107 = vcmask 1046534
          %vm2108 = vsmask.f32 6400
          %vm2109 = vmand %vm2107, %vm2108
          %vm2110 = vmor %vm2109, %vm2106
          %vm2111 = vcmask 1047559
          %vm2112 = vsmask.f32 7424
          %vm2113 = vmand %vm2111, %vm2112
          %vm2114 = vmor %vm2113, %vm2110
          %v2115 = vld [vmem:[%s265] sm:$0xff]
          %v2116 = vsel %vm2114, %v2033, %v2115
          %2117 = vst [vmem:[%s265] sm:$0xff] %v2116
          %v2118 = vld [vmem:[%s265 + $0x8] sm:$0x7f]
          %v2119 = vsel %vm2110, %v2081, %v2118
          %2120 = vst [vmem:[%s265 + $0x8] sm:$0x7f] %v2119
        $region52: #{tpu_custom_call.1} parent=39 // pred_fallthru
          _
        %p2121 = scmp.lt.s32.totalorder %s21, 3
        %s2122 = scalar_select %p2121, %s21, 3
        %s2123 = smul.addr %s2122, 15
        %s2124 = scalar_lea.vmem %s5, %s2123
        // Predicated region
        $region53: #{tpu_custom_call.1} parent=39 // pred_check
          %p2125 = pneg %p159
        $region54: #{tpu_custom_call.1} parent=39 // pred_check_branch
          %2127 = sbr.rel (%p2125) target = $region56
        $region55: #{tpu_custom_call.1} parent=39 // pred_region
          _
        $region56: #{tpu_custom_call.1} parent=39 // pred_fallthru
          _
      $region40: #{tpu_custom_call.1} parent=5 // pred_fallthru
        _
      %p2128 = scmp.le.s32.totalorder 2, %s12
      // Predicated region
      $region57: #{tpu_custom_call.1} parent=5 // pred_check
        %p2129 = pneg %p2128
      $region58: #{tpu_custom_call.1} parent=5 // pred_check_branch
        %2131 = sbr.rel (%p2129) target = $region60
      $region59: #{tpu_custom_call.1} parent=5 // pred_region
        %s2132 = ssub.s32 %s12, 2
        // Predicated region
        $region61: #{tpu_custom_call.1} parent=59 // pred_check
          %p2133 = pneg %p165
        $region62: #{tpu_custom_call.1} parent=59 // pred_check_branch
          %2135 = sbr.rel (%p2133) target = $region64
        $region63: #{tpu_custom_call.1} parent=59 // pred_region
          %p2136 = scmp.lt.s32.totalorder %s23, 3
          %s2137 = scalar_select %p2136, %s23, 3
          %s2138 = smul.addr %s2137, 15
          %s2139 = scalar_lea.vmem %s5, %s2138
        $region64: #{tpu_custom_call.1} parent=59 // pred_fallthru
          _
      $region60: #{tpu_custom_call.1} parent=5 // pred_fallthru
        _
    $region6: #{tpu_custom_call.1} parent=1 // loop_footer
      %s16 = sadd.s32 1, %s12
    $region7: #{tpu_custom_call.1} parent=1 // loop_footer_branch
      %11 = sbr.rel target = $region3
    $region8: #{tpu_custom_call.1} parent=1 // loop_exit
      _
    %2140 = vsyncpa [#allocation4], 1
    %s2141 = scalar_lea.sflag [#allocation4], 1
    %2142 = vsyncpa %s2141, 1

</llo_original>
